<compile_context>
chip_gen: v7x
topology: tpu7x:2x2x1
jax: 0.10.0
libtpu: 0.0.40
codegen_flags: <defaults>
</compile_context>

<pallas_src>
import math

import jax
import jax.numpy as jnp
from jax.experimental import pallas as pl
from jax.experimental.pallas import tpu as pltpu

# ------------------------------ small config ---------------------------------
B = 2            # batch
S = 128          # sequence length
H = 128          # hidden_size
V = 512          # vocab_size (small stand-in for 30522)
TM = 128         # tokens per grid step (2 independent tiles -> megacore-friendly)
STATS_W = 128    # lane-padded width of the per-tile statistics row
EPS = 1e-12      # BertLayerNorm eps

N_TOK = B * S
GRID = N_TOK // TM


def _sumall(x):
    """Sum a 2-D tile to a (1, 1) array (lane reduce then sublane reduce)."""
    return jnp.sum(jnp.sum(x, axis=1, keepdims=True), axis=0, keepdims=True)


# ------------------------------ fused kernel ----------------------------------
def mlm_head_kernel(seq_ref, lab_ref, wt_ref, tvec_ref, wd_ref, bd_ref, out_ref):
    # ---- BertPredictionHeadTransform: dense -> GELU -> LayerNorm ----
    x = seq_ref[...]                                     # (TM, H) bf16 (streamed)
    tv = tvec_ref[...]                                   # (3, H) f32: [bias, gamma, beta]
    h = jnp.dot(x, wt_ref[...], preferred_element_type=jnp.float32) + tv[0:1, :]
    # TODO(synk): exact erf GELU approximated with the tanh formulation (as in
    # MLPerf fused bias-GELU); logit error ~1e-4, well inside the tolerance.
    h = 0.5 * h * (1.0 + jnp.tanh(0.7978845608028654 * (h + 0.044715 * h * h * h)))
    mu = jnp.mean(h, axis=-1, keepdims=True)
    var = jnp.mean(jnp.square(h - mu), axis=-1, keepdims=True)
    h = (h - mu) * jax.lax.rsqrt(var + EPS) * tv[1:2, :] + tv[2:3, :]

    # ---- decoder (tied embedding) matmul to vocab + bias (logits stay in VMEM) ----
    logits = jnp.dot(h.astype(jnp.bfloat16), wd_ref[...],
                     preferred_element_type=jnp.float32) + bd_ref[...]   # (TM, V) f32

    # ---- masked-LM cross entropy (ignore_index=0) + accuracy statistics ----
    # TODO(synk): at real MLPerf dims (H=1024, V=30522) the resident (H,V) bf16
    # decoder weight + full-vocab logits tile exceed v7x's 64 MiB VMEM; a
    # trailing 'arbitrary' vocab grid axis with online-logsumexp scratch is
    # required there.  bf16 exp would further help on v6e/v7x (kept f32 here so
    # the same kernel is safe on v5e's f32-only EUP).
    lab = lab_ref[...]                                   # (TM, 1) int32
    valid = (lab != 0).astype(jnp.float32)               # (TM, 1)
    mx = jnp.max(logits, axis=-1, keepdims=True)          # (TM, 1)
    shifted = logits - mx                                  # shared by exp + label gather
    sumexp = jnp.sum(jnp.exp(shifted), axis=-1, keepdims=True)            # (TM, 1)
    viota = jax.lax.broadcasted_iota(jnp.int32, logits.shape, 1)
    shifted_lab = jnp.sum(jnp.where(viota == lab, shifted, 0.0),
                          axis=-1, keepdims=True)          # logit[label] - max
    ce = jnp.log(sumexp) - shifted_lab                     # per-token CE (= lse - logit_lab)
    correct = (shifted_lab >= 0.0).astype(jnp.float32)     # argmax == label (ties ~never)

    # ---- single lane-dense store of the per-tile partial sums ----
    lane = jax.lax.broadcasted_iota(jnp.int32, (1, STATS_W), 1)
    stats = (jnp.where(lane == 0, _sumall(valid * ce), 0.0)
             + jnp.where(lane == 1, _sumall(valid * correct), 0.0)
             + jnp.where(lane == 2, _sumall(valid), 0.0))
    out_ref[0, :, :] = stats


# --------------------------------- wrapper -------------------------------------
def _full_spec(shape):
    n = len(shape)
    return pl.BlockSpec(shape, lambda i, _n=n: (0,) * _n)


def prepare_head_params(params):
    """One-time weight prep (bf16 casts, tied-embedding transpose, bias packing).
    Hoisted out of the per-forward path so the decoder-weight transpose/cast is
    not paid per call (at real vocab it is a ~62 MB HBM-bound XLA op)."""
    return {
        "wt": params["w_transform"].astype(jnp.bfloat16),                  # (H, H)
        "tvec": jnp.stack([params["b_transform"], params["ln_g"],
                           params["ln_b"]], axis=0).astype(jnp.float32),   # (3, H)
        "wd": params["embedding"].T.astype(jnp.bfloat16),                  # (H, V) tied
        "bd": params["b_decoder"].reshape(1, V).astype(jnp.float32),       # (1, V)
        "w_nsp": params["w_nsp"].astype(jnp.float32),                      # (H, 2)
        "b_nsp": params["b_nsp"].astype(jnp.float32),                      # (2,)
    }


def bert_pretraining_heads_forward(sequence_output, pooled_output,
                                   masked_lm_labels, next_sentence_label, prepped):
    # MXU consumes bf16: stream the activations as bf16 (halves per-tile DMA).
    seq2d = sequence_output.reshape(N_TOK, H).astype(jnp.bfloat16)
    lab2d = masked_lm_labels.reshape(N_TOK, 1).astype(jnp.int32)

    stats = pl.pallas_call(
        mlm_head_kernel,
        out_shape=jax.ShapeDtypeStruct((GRID, 1, STATS_W), jnp.float32),
        grid=(GRID,),
        in_specs=[
            pl.BlockSpec((TM, H), lambda i: (i, 0)),        # sequence_output tokens (bf16)
            pl.BlockSpec((TM, 1), lambda i: (i, 0)),        # masked-LM labels
            _full_spec((H, H)),                             # transform dense weight (bf16)
            _full_spec((3, H)),                             # [transform bias, LN gamma, LN beta]
            _full_spec((H, V)),                             # decoder weight (bf16, tied)
            _full_spec((1, V)),                             # decoder bias
        ],
        out_specs=pl.BlockSpec((1, 1, STATS_W), lambda i: (i, 0, 0)),
        compiler_params=pltpu.CompilerParams(dimension_semantics=("parallel",)),
    )(seq2d, lab2d, prepped["wt"], prepped["tvec"], prepped["wd"], prepped["bd"])

    # ---- trivial scalar finalization of the per-tile partial sums ----
    stats = stats.reshape(GRID, STATS_W)
    loss_sum = jnp.sum(stats[:, 0])
    correct = jnp.sum(stats[:, 1])
    num_valid = jnp.sum(stats[:, 2])
    mlm_loss = loss_sum / num_valid
    mlm_acc = correct / num_valid

    # ---- NSP head + loss: a (B,H)x(H,2) matmul, kept in plain XLA so the two
    #      token tiles split evenly across v7x's TensorCores (no core-0 tail). ----
    nsp_logits = (pooled_output.astype(jnp.float32) @ prepped["w_nsp"]
                  + prepped["b_nsp"])                                   # (B, 2)
    nsl = next_sentence_label.reshape(-1)
    nsp_valid = (nsl != -1).astype(jnp.float32)                         # ignore_index=-1
    nlse = jax.scipy.special.logsumexp(nsp_logits, axis=-1)
    nll = jnp.take_along_axis(nsp_logits, jnp.clip(nsl, 0, 1)[:, None], axis=-1)[:, 0]
    nsp_loss = jnp.sum(nsp_valid * (nlse - nll)) / jnp.maximum(jnp.sum(nsp_valid), 1.0)

    total_loss = mlm_loss + nsp_loss
    return total_loss, mlm_acc, num_valid.astype(jnp.int32)


# ------------------------- plain-JAX reference (check) -------------------------
def reference_forward(sequence_output, pooled_output, masked_lm_labels,
                      next_sentence_label, params):
    x = sequence_output.reshape(-1, H).astype(jnp.float32)
    h = x @ params["w_transform"] + params["b_transform"]
    h = 0.5 * h * (1.0 + jax.lax.erf(h / math.sqrt(2.0)))          # exact BERT GELU
    mu = jnp.mean(h, -1, keepdims=True)
    var = jnp.mean((h - mu) ** 2, -1, keepdims=True)
    h = (h - mu) / jnp.sqrt(var + EPS) * params["ln_g"] + params["ln_b"]
    logits = h @ params["embedding"].T + params["b_decoder"]       # (N, V)

    labels = masked_lm_labels.reshape(-1)
    valid = labels != 0
    lse = jax.scipy.special.logsumexp(logits, axis=-1)
    ll = logits[jnp.arange(N_TOK), labels]
    num_valid = jnp.sum(valid)
    mlm_loss = jnp.sum(jnp.where(valid, lse - ll, 0.0)) / num_valid
    preds = jnp.argmax(logits, axis=-1)
    mlm_acc = jnp.sum((preds == labels) & valid) / num_valid

    nsp_logits = pooled_output @ params["w_nsp"] + params["b_nsp"]  # (B, 2)
    nsl = next_sentence_label.reshape(-1)
    nsp_valid = nsl != -1
    nlse = jax.scipy.special.logsumexp(nsp_logits, axis=-1)
    nll = nsp_logits[jnp.arange(B), jnp.clip(nsl, 0, 1)]
    nsp_loss = jnp.sum(jnp.where(nsp_valid, nlse - nll, 0.0)) / jnp.sum(nsp_valid)

    return mlm_loss + nsp_loss, mlm_acc, num_valid


# ----------------------------------- main --------------------------------------
def make_params(key):
    ks = jax.random.split(key, 8)
    std = 0.02
    return {
        "w_transform": std * jax.random.normal(ks[0], (H, H), jnp.float32),
        "b_transform": 0.01 * jax.random.normal(ks[1], (H,), jnp.float32),
        "ln_g": 1.0 + 0.1 * jax.random.normal(ks[2], (H,), jnp.float32),
        "ln_b": 0.01 * jax.random.normal(ks[3], (H,), jnp.float32),
        "embedding": std * jax.random.normal(ks[4], (V, H), jnp.float32),  # tied decoder weight
        "b_decoder": 0.01 * jax.random.normal(ks[5], (V,), jnp.float32),
        "w_nsp": std * jax.random.normal(ks[6], (H, 2), jnp.float32),
        "b_nsp": 0.01 * jax.random.normal(ks[7], (2,), jnp.float32),
    }


if __name__ == "__main__":
    key = jax.random.PRNGKey(0)
    k_seq, k_pool, k_mask, k_ids, k_p = jax.random.split(key, 5)

    sequence_output = jax.random.normal(k_seq, (B, S, H), jnp.float32)
    pooled_output = jnp.tanh(jax.random.normal(k_pool, (B, H), jnp.float32))

    # MLPerf convention: label 0 = not masked (ignore_index=0), else target token id.
    mask = jax.random.uniform(k_mask, (B, S)) < 0.15
    ids = jax.random.randint(k_ids, (B, S), 1, V)
    masked_lm_labels = jnp.where(mask, ids, 0).astype(jnp.int32)
    next_sentence_label = jnp.array([0, 1], jnp.int32)

    # TODO(synk): dense_seq_output=True path (torch.nonzero + index_select with
    # data-dependent size) has no static-shape Pallas equivalent; the
    # dense_seq_output=False path is implemented (identical loss semantics).
    params = make_params(k_p)
    prepped = prepare_head_params(params)   # one-time weight prep (hoisted)

    fwd = jax.jit(bert_pretraining_heads_forward)
    total_loss, mlm_acc, num_valid = jax.block_until_ready(
        fwd(sequence_output, pooled_output, masked_lm_labels,
            next_sentence_label, prepped))

    ref_loss, ref_acc, ref_valid = reference_forward(
        sequence_output, pooled_output, masked_lm_labels,
        next_sentence_label, params)

    assert int(num_valid) == int(ref_valid), (int(num_valid), int(ref_valid))
    assert abs(float(total_loss) - float(ref_loss)) < 5e-2, (float(total_loss), float(ref_loss))
    assert abs(float(mlm_acc) - float(ref_acc)) < 6e-2, (float(mlm_acc), float(ref_acc))

    print("KERNEL_OK")
</pallas_src>

<mosaic_0001>
module attributes {stable_mosaic.version = 11 : i64} {
  func.func @mlm_head_kernel(%arg0: i32, %arg1: memref<128x128xbf16, #tpu.memory_space<vmem>>, %arg2: memref<128x1xi32, #tpu.memory_space<vmem>>, %arg3: memref<128x128xbf16, #tpu.memory_space<vmem>>, %arg4: memref<3x128xf32, #tpu.memory_space<vmem>>, %arg5: memref<128x512xbf16, #tpu.memory_space<vmem>>, %arg6: memref<1x512xf32, #tpu.memory_space<vmem>>, %arg7: memref<1x1x128xf32, #tpu.memory_space<vmem>>) attributes {dimension_semantics = [#tpu.dimension_semantics<parallel>], iteration_bounds = array<i64: 2>, scalar_prefetch = 0 : i64, scratch_operands = 0 : i64, tpu.core_type = #tpu.core_type<tc>, window_params = [{transform_indices = @transform_0, window_bounds = array<i64: 128, 128>}, {transform_indices = @transform_1, window_bounds = array<i64: 128, 1>}, {pipeline_mode = #tpu.pipeline_mode<synchronous>, transform_indices = @transform_2, window_bounds = array<i64: 128, 128>}, {pipeline_mode = #tpu.pipeline_mode<synchronous>, transform_indices = @transform_3, window_bounds = array<i64: 3, 128>}, {pipeline_mode = #tpu.pipeline_mode<synchronous>, transform_indices = @transform_4, window_bounds = array<i64: 128, 512>}, {pipeline_mode = #tpu.pipeline_mode<synchronous>, transform_indices = @transform_5, window_bounds = array<i64: 1, 512>}, {transform_indices = @transform_6, window_bounds = array<i64: 1, 1, 128>}]} {
    %c0 = arith.constant 0 : index
    %c0_0 = arith.constant 0 : index
    %0 = vector.load %arg1[%c0, %c0_0] : memref<128x128xbf16, #tpu.memory_space<vmem>>, vector<128x128xbf16>
    %c0_1 = arith.constant 0 : index
    %c0_2 = arith.constant 0 : index
    %1 = vector.load %arg4[%c0_1, %c0_2] : memref<3x128xf32, #tpu.memory_space<vmem>>, vector<3x128xf32>
    %c0_3 = arith.constant 0 : index
    %c0_4 = arith.constant 0 : index
    %2 = vector.load %arg3[%c0_3, %c0_4] : memref<128x128xbf16, #tpu.memory_space<vmem>>, vector<128x128xbf16>
    %cst = arith.constant dense<0.000000e+00> : vector<128x128xf32>
    %3 = tpu.matmul %0, %2, %cst {dimension_numbers = #tpu.dot_dimension_numbers<[1], [0], [0], [1], [0, 0, 1, 1], [], []>} : vector<128x128xbf16>, vector<128x128xbf16>, vector<128x128xf32> -> vector<128x128xf32>
    %4 = vector.extract_strided_slice %1 {offsets = [0, 0], sizes = [1, 128], strides = [1, 1]} : vector<3x128xf32> to vector<1x128xf32>
    %5 = vector.broadcast %4 : vector<1x128xf32> to vector<128x128xf32>
    %6 = arith.addf %3, %5 : vector<128x128xf32>
    %cst_5 = arith.constant 5.000000e-01 : f32
    %7 = vector.broadcast %cst_5 : f32 to vector<128x128xf32>
    %8 = arith.mulf %7, %6 : vector<128x128xf32>
    %cst_6 = arith.constant 4.471500e-02 : f32
    %9 = vector.broadcast %cst_6 : f32 to vector<128x128xf32>
    %10 = arith.mulf %9, %6 : vector<128x128xf32>
    %11 = arith.mulf %10, %6 : vector<128x128xf32>
    %12 = arith.mulf %11, %6 : vector<128x128xf32>
    %13 = arith.addf %6, %12 : vector<128x128xf32>
    %cst_7 = arith.constant 0.797884583 : f32
    %14 = vector.broadcast %cst_7 : f32 to vector<128x128xf32>
    %15 = arith.mulf %14, %13 : vector<128x128xf32>
    %16 = math.tanh %15 : vector<128x128xf32>
    %cst_8 = arith.constant 1.000000e+00 : f32
    %17 = vector.broadcast %cst_8 : f32 to vector<128x128xf32>
    %18 = arith.addf %17, %16 : vector<128x128xf32>
    %19 = arith.mulf %8, %18 : vector<128x128xf32>
    %cst_9 = arith.constant dense<0.000000e+00> : vector<128xf32>
    %20 = vector.multi_reduction <add>, %19, %cst_9 [1] : vector<128x128xf32> to vector<128xf32>
    %21 = vector.shape_cast %20 : vector<128xf32> to vector<128x1xf32>
    %cst_10 = arith.constant 1.280000e+02 : f32
    %22 = vector.broadcast %cst_10 : f32 to vector<128x1xf32>
    %23 = arith.divf %21, %22 : vector<128x1xf32>
    %24 = vector.broadcast %23 : vector<128x1xf32> to vector<128x128xf32>
    %25 = arith.subf %19, %24 : vector<128x128xf32>
    %26 = arith.mulf %25, %25 : vector<128x128xf32>
    %cst_11 = arith.constant dense<0.000000e+00> : vector<128xf32>
    %27 = vector.multi_reduction <add>, %26, %cst_11 [1] : vector<128x128xf32> to vector<128xf32>
    %28 = vector.shape_cast %27 : vector<128xf32> to vector<128x1xf32>
    %cst_12 = arith.constant 1.280000e+02 : f32
    %29 = vector.broadcast %cst_12 : f32 to vector<128x1xf32>
    %30 = arith.divf %28, %29 : vector<128x1xf32>
    %31 = vector.broadcast %23 : vector<128x1xf32> to vector<128x128xf32>
    %32 = arith.subf %19, %31 : vector<128x128xf32>
    %cst_13 = arith.constant 9.99999996E-13 : f32
    %33 = vector.broadcast %cst_13 : f32 to vector<128x1xf32>
    %34 = arith.addf %30, %33 : vector<128x1xf32>
    %35 = math.rsqrt %34 : vector<128x1xf32>
    %36 = vector.broadcast %35 : vector<128x1xf32> to vector<128x128xf32>
    %37 = arith.mulf %32, %36 : vector<128x128xf32>
    %38 = vector.extract_strided_slice %1 {offsets = [1, 0], sizes = [1, 128], strides = [1, 1]} : vector<3x128xf32> to vector<1x128xf32>
    %39 = vector.broadcast %38 : vector<1x128xf32> to vector<128x128xf32>
    %40 = arith.mulf %37, %39 : vector<128x128xf32>
    %41 = vector.extract_strided_slice %1 {offsets = [2, 0], sizes = [1, 128], strides = [1, 1]} : vector<3x128xf32> to vector<1x128xf32>
    %42 = vector.broadcast %41 : vector<1x128xf32> to vector<128x128xf32>
    %43 = arith.addf %40, %42 : vector<128x128xf32>
    %44 = arith.truncf %43 : vector<128x128xf32> to vector<128x128xbf16>
    %c0_14 = arith.constant 0 : index
    %c0_15 = arith.constant 0 : index
    %45 = vector.load %arg5[%c0_14, %c0_15] : memref<128x512xbf16, #tpu.memory_space<vmem>>, vector<128x512xbf16>
    %cst_16 = arith.constant dense<0.000000e+00> : vector<128x512xf32>
    %46 = tpu.matmul %44, %45, %cst_16 {dimension_numbers = #tpu.dot_dimension_numbers<[1], [0], [0], [1], [0, 0, 1, 1], [], []>} : vector<128x128xbf16>, vector<128x512xbf16>, vector<128x512xf32> -> vector<128x512xf32>
    %c0_17 = arith.constant 0 : index
    %c0_18 = arith.constant 0 : index
    %47 = vector.load %arg6[%c0_17, %c0_18] : memref<1x512xf32, #tpu.memory_space<vmem>>, vector<1x512xf32>
    %48 = vector.broadcast %47 : vector<1x512xf32> to vector<128x512xf32>
    %49 = arith.addf %46, %48 : vector<128x512xf32>
    %c0_19 = arith.constant 0 : index
    %c0_20 = arith.constant 0 : index
    %50 = vector.load %arg2[%c0_19, %c0_20] : memref<128x1xi32, #tpu.memory_space<vmem>>, vector<128x1xi32>
    %c0_i32 = arith.constant 0 : i32
    %51 = vector.broadcast %c0_i32 : i32 to vector<128x1xi32>
    %52 = arith.cmpi ne, %50, %51 : vector<128x1xi32>
    %53 = arith.extui %52 : vector<128x1xi1> to vector<128x1xi32>
    %54 = arith.sitofp %53 : vector<128x1xi32> to vector<128x1xf32>
    %cst_21 = arith.constant dense<0xFF800000> : vector<128xf32>
    %55 = vector.multi_reduction <maximumf>, %49, %cst_21 [1] : vector<128x512xf32> to vector<128xf32>
    %56 = vector.shape_cast %55 : vector<128xf32> to vector<128x1xf32>
    %57 = vector.broadcast %56 : vector<128x1xf32> to vector<128x512xf32>
    %58 = arith.subf %49, %57 : vector<128x512xf32>
    %59 = math.exp %58 : vector<128x512xf32>
    %cst_22 = arith.constant dense<0.000000e+00> : vector<128xf32>
    %60 = vector.multi_reduction <add>, %59, %cst_22 [1] : vector<128x512xf32> to vector<128xf32>
    %61 = vector.shape_cast %60 : vector<128xf32> to vector<128x1xf32>
    %62 = tpu.iota {dimensions = array<i32: 1>} : vector<128x512xi32>
    %63 = vector.broadcast %50 : vector<128x1xi32> to vector<128x512xi32>
    %64 = arith.cmpi eq, %62, %63 : vector<128x512xi32>
    %cst_23 = arith.constant 0.000000e+00 : f32
    %65 = vector.broadcast %cst_23 : f32 to vector<128x512xf32>
    %66 = arith.select %64, %58, %65 : vector<128x512xi1>, vector<128x512xf32>
    %cst_24 = arith.constant dense<0.000000e+00> : vector<128xf32>
    %67 = vector.multi_reduction <add>, %66, %cst_24 [1] : vector<128x512xf32> to vector<128xf32>
    %68 = vector.shape_cast %67 : vector<128xf32> to vector<128x1xf32>
    %69 = math.log %61 : vector<128x1xf32>
    %70 = arith.subf %69, %68 : vector<128x1xf32>
    %cst_25 = arith.constant 0.000000e+00 : f32
    %71 = vector.broadcast %cst_25 : f32 to vector<128x1xf32>
    %72 = arith.cmpf oge, %68, %71 : vector<128x1xf32>
    %73 = arith.extui %72 : vector<128x1xi1> to vector<128x1xi32>
    %74 = arith.sitofp %73 : vector<128x1xi32> to vector<128x1xf32>
    %75 = tpu.iota {dimensions = array<i32: 1>} : vector<1x128xi32>
    %c0_i32_26 = arith.constant 0 : i32
    %76 = vector.broadcast %c0_i32_26 : i32 to vector<1x128xi32>
    %77 = arith.cmpi eq, %75, %76 : vector<1x128xi32>
    %78 = arith.mulf %54, %70 : vector<128x1xf32>
    %cst_27 = arith.constant dense<0.000000e+00> : vector<128xf32>
    %79 = vector.multi_reduction <add>, %78, %cst_27 [1] : vector<128x1xf32> to vector<128xf32>
    %80 = vector.shape_cast %79 : vector<128xf32> to vector<128x1xf32>
    %cst_28 = arith.constant dense<0.000000e+00> : vector<1xf32>
    %81 = vector.multi_reduction <add>, %80, %cst_28 [0] : vector<128x1xf32> to vector<1xf32>
    %82 = vector.shape_cast %81 : vector<1xf32> to vector<1x1xf32>
    %cst_29 = arith.constant 0.000000e+00 : f32
    %83 = vector.shape_cast %82 : vector<1x1xf32> to vector<1x1xf32>
    %84 = vector.broadcast %83 : vector<1x1xf32> to vector<1x128xf32>
    %85 = vector.broadcast %cst_29 : f32 to vector<1x128xf32>
    %86 = arith.select %77, %84, %85 : vector<1x128xi1>, vector<1x128xf32>
    %c1_i32 = arith.constant 1 : i32
    %87 = vector.broadcast %c1_i32 : i32 to vector<1x128xi32>
    %88 = arith.cmpi eq, %75, %87 : vector<1x128xi32>
    %89 = arith.mulf %54, %74 : vector<128x1xf32>
    %cst_30 = arith.constant dense<0.000000e+00> : vector<128xf32>
    %90 = vector.multi_reduction <add>, %89, %cst_30 [1] : vector<128x1xf32> to vector<128xf32>
    %91 = vector.shape_cast %90 : vector<128xf32> to vector<128x1xf32>
    %cst_31 = arith.constant dense<0.000000e+00> : vector<1xf32>
    %92 = vector.multi_reduction <add>, %91, %cst_31 [0] : vector<128x1xf32> to vector<1xf32>
    %93 = vector.shape_cast %92 : vector<1xf32> to vector<1x1xf32>
    %cst_32 = arith.constant 0.000000e+00 : f32
    %94 = vector.shape_cast %93 : vector<1x1xf32> to vector<1x1xf32>
    %95 = vector.broadcast %94 : vector<1x1xf32> to vector<1x128xf32>
    %96 = vector.broadcast %cst_32 : f32 to vector<1x128xf32>
    %97 = arith.select %88, %95, %96 : vector<1x128xi1>, vector<1x128xf32>
    %98 = arith.addf %86, %97 : vector<1x128xf32>
    %c2_i32 = arith.constant 2 : i32
    %99 = vector.broadcast %c2_i32 : i32 to vector<1x128xi32>
    %100 = arith.cmpi eq, %75, %99 : vector<1x128xi32>
    %cst_33 = arith.constant dense<0.000000e+00> : vector<128xf32>
    %101 = vector.multi_reduction <add>, %54, %cst_33 [1] : vector<128x1xf32> to vector<128xf32>
    %102 = vector.shape_cast %101 : vector<128xf32> to vector<128x1xf32>
    %cst_34 = arith.constant dense<0.000000e+00> : vector<1xf32>
    %103 = vector.multi_reduction <add>, %102, %cst_34 [0] : vector<128x1xf32> to vector<1xf32>
    %104 = vector.shape_cast %103 : vector<1xf32> to vector<1x1xf32>
    %cst_35 = arith.constant 0.000000e+00 : f32
    %105 = vector.shape_cast %104 : vector<1x1xf32> to vector<1x1xf32>
    %106 = vector.broadcast %105 : vector<1x1xf32> to vector<1x128xf32>
    %107 = vector.broadcast %cst_35 : f32 to vector<1x128xf32>
    %108 = arith.select %100, %106, %107 : vector<1x128xi1>, vector<1x128xf32>
    %109 = arith.addf %98, %108 : vector<1x128xf32>
    %c0_36 = arith.constant 0 : index
    %c0_37 = arith.constant 0 : index
    %c0_38 = arith.constant 0 : index
    %110 = vector.load %arg7[%c0_36, %c0_37, %c0_38] : memref<1x1x128xf32, #tpu.memory_space<vmem>>, vector<1x1x128xf32>
    %111 = vector.shape_cast %110 : vector<1x1x128xf32> to vector<1x128xf32>
    %112 = vector.shape_cast %109 : vector<1x128xf32> to vector<1x1x128xf32>
    tpu.vector_store %arg7[%c0_36, %c0_37, %c0_38], %112 {strides = array<i32>} : memref<1x1x128xf32, #tpu.memory_space<vmem>>, vector<1x1x128xf32>,
    return
  }
  func.func @transform_0(%arg0: i32) -> (i32, i32) {
    %c0_i32 = arith.constant 0 : i32
    %c0_i32_0 = arith.constant 0 : i32
    return %arg0, %c0_i32 : i32, i32
  }
  func.func @transform_1(%arg0: i32) -> (i32, i32) {
    %c0_i32 = arith.constant 0 : i32
    %c0_i32_0 = arith.constant 0 : i32
    return %arg0, %c0_i32 : i32, i32
  }
  func.func @transform_2(%arg0: i32) -> (i32, i32) {
    %c0_i32 = arith.constant 0 : i32
    %c0_i32_0 = arith.constant 0 : i32
    %c0_i32_1 = arith.constant 0 : i32
    return %c0_i32, %c0_i32_0 : i32, i32
  }
  func.func @transform_3(%arg0: i32) -> (i32, i32) {
    %c0_i32 = arith.constant 0 : i32
    %c0_i32_0 = arith.constant 0 : i32
    %c0_i32_1 = arith.constant 0 : i32
    return %c0_i32, %c0_i32_0 : i32, i32
  }
  func.func @transform_4(%arg0: i32) -> (i32, i32) {
    %c0_i32 = arith.constant 0 : i32
    %c0_i32_0 = arith.constant 0 : i32
    %c0_i32_1 = arith.constant 0 : i32
    return %c0_i32, %c0_i32_0 : i32, i32
  }
  func.func @transform_5(%arg0: i32) -> (i32, i32) {
    %c0_i32 = arith.constant 0 : i32
    %c0_i32_0 = arith.constant 0 : i32
    %c0_i32_1 = arith.constant 0 : i32
    return %c0_i32, %c0_i32_0 : i32, i32
  }
  func.func @transform_6(%arg0: i32) -> (i32, i32, i32) {
    %c0_i32 = arith.constant 0 : i32
    %c0_i32_0 = arith.constant 0 : i32
    %c0_i32_1 = arith.constant 0 : i32
    return %arg0, %c0_i32, %c0_i32_0 : i32, i32, i32
  }
}

</mosaic_0001>

<llo_original>
// kernel: bert_pretraining_heads_forward.1
$region0: #{bert_pretraining_heads_forward.1}
  #allocation0 [shape = 'u32[]', space=smem, size = 0x4, offset = 0x4, fixed_abs, tag = 'smem constant byte address 0x4 - core index']
  #allocation1 [shape = 'u32[144,128]{1,0:T(1,128)}', space=vmem, size = 0x12000, scoped, tag = 'internal scratch']
  %s0 = inlined_call_operand.vmem [shape: bf16[256,128], index: 0, kind: input, shape index: {}]
  %s1 = inlined_call_operand.vmem [shape: s32[256,1], index: 1, kind: input, shape index: {}]
  %s2 = inlined_call_operand.vmem [shape: bf16[128,128], index: 2, kind: input, shape index: {}]
  %s3 = inlined_call_operand.vmem [shape: f32[3,128], index: 3, kind: input, shape index: {}]
  %s4 = inlined_call_operand.vmem [shape: bf16[128,512], index: 4, kind: input, shape index: {}]
  %s5 = inlined_call_operand.vmem [shape: f32[1,512], index: 5, kind: input, shape index: {}]
  %s6 = inlined_call_operand.vmem [shape: f32[2,1,128], index: 6, kind: output, shape index: {}]
  %s7 = sld [smem:[#allocation0]]
  $region57: #{bert_pretraining_heads_forward.1} parent=0
    _
  %s9 = ssub.s32 1, %s7
  %s10 = scalar_select 0, %s9, %s7
  loop: start=0, step=1, limit=4
  $region2: #{bert_pretraining_heads_forward.1} parent=0 // loop_pre_header
    _
  $region3: #{bert_pretraining_heads_forward.1} parent=0 // loop_header
    %s12 = sphi 0, %s16
    %p13 = scmp.ge.s32.totalorder %s12, 4
    %s22 = sphi 0, %s24
    %s25 = sphi 0, %s22
    %s26 = sphi 0, %s25
    %s42 = sphi 0, %s26
    %s48 = sphi 0, %s50
    %s51 = sphi 0, %s48
    %s52 = sphi 0, %s51
    %s68 = sphi 0, %s52
    %s72 = sphi 0, %s72
    %s74 = sphi 0, %s72
    %s75 = sphi 0, %s74
    %s89 = sphi 0, %s75
    %s93 = sphi 0, %s93
    %s95 = sphi 0, %s93
    %s96 = sphi 0, %s95
    %s110 = sphi 0, %s96
    %s114 = sphi 0, %s114
    %s116 = sphi 0, %s114
    %s117 = sphi 0, %s116
    %s131 = sphi 0, %s117
    %s135 = sphi 0, %s135
    %s137 = sphi 0, %s135
    %s138 = sphi 0, %s137
    %s152 = sphi 0, %s138
    %s158 = sphi 0, %s160
    %s161 = sphi 0, %s158
    %s162 = sphi 0, %s161
    %s178 = sphi 0, %s162
  $region4: #{bert_pretraining_heads_forward.1} parent=0 // loop_header_branch
    %15 = sbr.rel (%p13) target = $region8
  $region5: #{bert_pretraining_heads_forward.1} parent=0 // loop_body
    %s17 = ssub.s32 %s12, 1
    %s18 = ssub.s32 %s12, 2
    %s19 = sadd.s32 %s12, 1
    %s20 = ssub.s32 %s12, %s19
    %p21 = scmp.eq.s32.totalorder %s20, 0
    %s23 = sadd.s32 %s22, 1
    %s24 = scalar_select %p21, %s22, %s23
    %p27 = pneg %p21
    %p28 = scmp.eq.s32.totalorder %s12, 1
    %p29 = por %p27, %p28
    %p30 = scmp.ne.s32.totalorder %s22, %s25
    %p31 = scmp.eq.s32.totalorder %s12, 0
    %p32 = por %p30, %p31
    %p33 = scmp.ne.s32.totalorder %s22, %s25
    %p34 = scmp.eq.s32.totalorder %s17, 1
    %p35 = por %p33, %p34
    %p36 = scmp.ne.s32.totalorder %s25, %s26
    %p37 = scmp.eq.s32.totalorder %s17, 0
    %p38 = por %p36, %p37
    %p39 = scmp.ne.s32.totalorder %s25, %s26
    %p40 = scmp.eq.s32.totalorder %s18, 1
    %p41 = por %p39, %p40
    %p43 = scmp.ne.s32.totalorder %s26, %s42
    %p44 = scmp.eq.s32.totalorder %s18, 0
    %p45 = por %p43, %p44
    %s46 = ssub.s32 %s12, %s19
    %p47 = scmp.eq.s32.totalorder %s46, 0
    %s49 = sadd.s32 %s48, 1
    %s50 = scalar_select %p47, %s48, %s49
    %p53 = pneg %p47
    %p54 = scmp.eq.s32.totalorder %s12, 1
    %p55 = por %p53, %p54
    %p56 = scmp.ne.s32.totalorder %s48, %s51
    %p57 = scmp.eq.s32.totalorder %s12, 0
    %p58 = por %p56, %p57
    %p59 = scmp.ne.s32.totalorder %s48, %s51
    %p60 = scmp.eq.s32.totalorder %s17, 1
    %p61 = por %p59, %p60
    %p62 = scmp.ne.s32.totalorder %s51, %s52
    %p63 = scmp.eq.s32.totalorder %s17, 0
    %p64 = por %p62, %p63
    %p65 = scmp.ne.s32.totalorder %s51, %s52
    %p66 = scmp.eq.s32.totalorder %s18, 1
    %p67 = por %p65, %p66
    %p69 = scmp.ne.s32.totalorder %s52, %s68
    %p70 = scmp.eq.s32.totalorder %s18, 0
    %p71 = por %p69, %p70
    %s73 = sadd.s32 %s72, 1
    %p76 = scmp.eq.s32.totalorder %s12, 1
    %p77 = scmp.ne.s32.totalorder %s72, %s74
    %p78 = scmp.eq.s32.totalorder %s12, 0
    %p79 = por %p77, %p78
    %p80 = scmp.ne.s32.totalorder %s72, %s74
    %p81 = scmp.eq.s32.totalorder %s17, 1
    %p82 = por %p80, %p81
    %p83 = scmp.ne.s32.totalorder %s74, %s75
    %p84 = scmp.eq.s32.totalorder %s17, 0
    %p85 = por %p83, %p84
    %p86 = scmp.ne.s32.totalorder %s74, %s75
    %p87 = scmp.eq.s32.totalorder %s18, 1
    %p88 = por %p86, %p87
    %p90 = scmp.ne.s32.totalorder %s75, %s89
    %p91 = scmp.eq.s32.totalorder %s18, 0
    %p92 = por %p90, %p91
    %s94 = sadd.s32 %s93, 1
    %p97 = scmp.eq.s32.totalorder %s12, 1
    %p98 = scmp.ne.s32.totalorder %s93, %s95
    %p99 = scmp.eq.s32.totalorder %s12, 0
    %p100 = por %p98, %p99
    %p101 = scmp.ne.s32.totalorder %s93, %s95
    %p102 = scmp.eq.s32.totalorder %s17, 1
    %p103 = por %p101, %p102
    %p104 = scmp.ne.s32.totalorder %s95, %s96
    %p105 = scmp.eq.s32.totalorder %s17, 0
    %p106 = por %p104, %p105
    %p107 = scmp.ne.s32.totalorder %s95, %s96
    %p108 = scmp.eq.s32.totalorder %s18, 1
    %p109 = por %p107, %p108
    %p111 = scmp.ne.s32.totalorder %s96, %s110
    %p112 = scmp.eq.s32.totalorder %s18, 0
    %p113 = por %p111, %p112
    %s115 = sadd.s32 %s114, 1
    %p118 = scmp.eq.s32.totalorder %s12, 1
    %p119 = scmp.ne.s32.totalorder %s114, %s116
    %p120 = scmp.eq.s32.totalorder %s12, 0
    %p121 = por %p119, %p120
    %p122 = scmp.ne.s32.totalorder %s114, %s116
    %p123 = scmp.eq.s32.totalorder %s17, 1
    %p124 = por %p122, %p123
    %p125 = scmp.ne.s32.totalorder %s116, %s117
    %p126 = scmp.eq.s32.totalorder %s17, 0
    %p127 = por %p125, %p126
    %p128 = scmp.ne.s32.totalorder %s116, %s117
    %p129 = scmp.eq.s32.totalorder %s18, 1
    %p130 = por %p128, %p129
    %p132 = scmp.ne.s32.totalorder %s117, %s131
    %p133 = scmp.eq.s32.totalorder %s18, 0
    %p134 = por %p132, %p133
    %s136 = sadd.s32 %s135, 1
    %p139 = scmp.eq.s32.totalorder %s12, 1
    %p140 = scmp.ne.s32.totalorder %s135, %s137
    %p141 = scmp.eq.s32.totalorder %s12, 0
    %p142 = por %p140, %p141
    %p143 = scmp.ne.s32.totalorder %s135, %s137
    %p144 = scmp.eq.s32.totalorder %s17, 1
    %p145 = por %p143, %p144
    %p146 = scmp.ne.s32.totalorder %s137, %s138
    %p147 = scmp.eq.s32.totalorder %s17, 0
    %p148 = por %p146, %p147
    %p149 = scmp.ne.s32.totalorder %s137, %s138
    %p150 = scmp.eq.s32.totalorder %s18, 1
    %p151 = por %p149, %p150
    %p153 = scmp.ne.s32.totalorder %s138, %s152
    %p154 = scmp.eq.s32.totalorder %s18, 0
    %p155 = por %p153, %p154
    %s156 = ssub.s32 %s12, %s19
    %p157 = scmp.eq.s32.totalorder %s156, 0
    %s159 = sadd.s32 %s158, 1
    %s160 = scalar_select %p157, %s158, %s159
    %p163 = pneg %p157
    %p164 = scmp.eq.s32.totalorder %s12, 1
    %p165 = por %p163, %p164
    %p166 = scmp.ne.s32.totalorder %s158, %s161
    %p167 = scmp.eq.s32.totalorder %s12, 0
    %p168 = por %p166, %p167
    %p169 = scmp.ne.s32.totalorder %s158, %s161
    %p170 = scmp.eq.s32.totalorder %s17, 1
    %p171 = por %p169, %p170
    %p172 = scmp.ne.s32.totalorder %s161, %s162
    %p173 = scmp.eq.s32.totalorder %s17, 0
    %p174 = por %p172, %p173
    %p175 = scmp.ne.s32.totalorder %s161, %s162
    %p176 = scmp.eq.s32.totalorder %s18, 1
    %p177 = por %p175, %p176
    %p179 = scmp.ne.s32.totalorder %s162, %s178
    %p180 = scmp.eq.s32.totalorder %s18, 0
    %p181 = por %p179, %p180
    %p182 = scmp.le.s32.totalorder 1, %s12
    %p183 = scmp.lt.s32.totalorder %s12, 3
    %p184 = pnand %p182, %p183
    %p185 = pneg %p184
    // Predicated region
    $region9: #{bert_pretraining_heads_forward.1} parent=5 // pred_check
      _
    $region10: #{bert_pretraining_heads_forward.1} parent=5 // pred_check_branch
      %187 = sbr.rel (%p184) target = $region12
    $region11: #{bert_pretraining_heads_forward.1} parent=5 // pred_region
      %s188 = ssub.s32 %s12, 1
      // Predicated region
      $region13: #{bert_pretraining_heads_forward.1} parent=11 // pred_check
        %p189 = pneg %p85
      $region14: #{bert_pretraining_heads_forward.1} parent=11 // pred_check_branch
        %191 = sbr.rel (%p189) target = $region16
      $region15: #{bert_pretraining_heads_forward.1} parent=11 // pred_region
        _
      $region16: #{bert_pretraining_heads_forward.1} parent=11 // pred_fallthru
        _
      // Predicated region
      $region17: #{bert_pretraining_heads_forward.1} parent=11 // pred_check
        %p192 = pneg %p106
      $region18: #{bert_pretraining_heads_forward.1} parent=11 // pred_check_branch
        %194 = sbr.rel (%p192) target = $region20
      $region19: #{bert_pretraining_heads_forward.1} parent=11 // pred_region
        _
      $region20: #{bert_pretraining_heads_forward.1} parent=11 // pred_fallthru
        _
      // Predicated region
      $region21: #{bert_pretraining_heads_forward.1} parent=11 // pred_check
        %p195 = pneg %p127
      $region22: #{bert_pretraining_heads_forward.1} parent=11 // pred_check_branch
        %197 = sbr.rel (%p195) target = $region24
      $region23: #{bert_pretraining_heads_forward.1} parent=11 // pred_region
        _
      $region24: #{bert_pretraining_heads_forward.1} parent=11 // pred_fallthru
        _
      // Predicated region
      $region25: #{bert_pretraining_heads_forward.1} parent=11 // pred_check
        %p198 = pneg %p148
      $region26: #{bert_pretraining_heads_forward.1} parent=11 // pred_check_branch
        %200 = sbr.rel (%p198) target = $region28
      $region27: #{bert_pretraining_heads_forward.1} parent=11 // pred_region
        _
      $region28: #{bert_pretraining_heads_forward.1} parent=11 // pred_fallthru
        _
    $region12: #{bert_pretraining_heads_forward.1} parent=5 // pred_fallthru
      _
    %p201 = scmp.lt.s32.totalorder %s12, 2
    // Predicated region
    $region29: #{bert_pretraining_heads_forward.1} parent=5 // pred_check
      %p202 = pneg %p201
    $region30: #{bert_pretraining_heads_forward.1} parent=5 // pred_check_branch
      %204 = sbr.rel (%p202) target = $region32
    $region31: #{bert_pretraining_heads_forward.1} parent=5 // pred_region
      // Predicated region
      $region33: #{bert_pretraining_heads_forward.1} parent=31 // pred_check
        %p205 = pneg %p32
      $region34: #{bert_pretraining_heads_forward.1} parent=31 // pred_check_branch
        %207 = sbr.rel (%p205) target = $region36
      $region35: #{bert_pretraining_heads_forward.1} parent=31 // pred_region
        %s208 = smul.u32 16, %s12
        %p209 = scmp.lt.s32.totalorder %s208, 31
        %s210 = scalar_select %p209, %s208, 31
        %s211 = smul.addr %s210, 4
        %s212 = scalar_lea.vmem %s0, %s211
        %s213 = smul.u32 16, %s12
      $region36: #{bert_pretraining_heads_forward.1} parent=31 // pred_fallthru
        _
      // Predicated region
      $region37: #{bert_pretraining_heads_forward.1} parent=31 // pred_check
        %p214 = pneg %p58
      $region38: #{bert_pretraining_heads_forward.1} parent=31 // pred_check_branch
        %216 = sbr.rel (%p214) target = $region40
      $region39: #{bert_pretraining_heads_forward.1} parent=31 // pred_region
        %s217 = smul.u32 16, %s12
        %p218 = scmp.lt.s32.totalorder %s217, 31
        %s219 = scalar_select %p218, %s217, 31
        %s220 = smul.addr %s219, 8
        %s221 = scalar_lea.vmem %s1, %s220
        %s222 = smul.u32 16, %s12
      $region40: #{bert_pretraining_heads_forward.1} parent=31 // pred_fallthru
        _
    $region32: #{bert_pretraining_heads_forward.1} parent=5 // pred_fallthru
      _
    %p223 = scmp.le.s32.totalorder 1, %s12
    %p224 = scmp.lt.s32.totalorder %s12, 3
    %p225 = pnand %p223, %p224
    %p226 = pneg %p225
    // Predicated region
    $region41: #{bert_pretraining_heads_forward.1} parent=5 // pred_check
      _
    $region42: #{bert_pretraining_heads_forward.1} parent=5 // pred_check_branch
      %228 = sbr.rel (%p225) target = $region44
    $region43: #{bert_pretraining_heads_forward.1} parent=5 // pred_region
      %s229 = ssub.s32 %s12, 1
      %s230 = smul.u32 16, %s17
      %p231 = scmp.lt.s32.totalorder %s230, 31
      %s232 = scalar_select %p231, %s230, 31
      %s233 = smul.addr %s232, 4
      %s234 = scalar_lea.vmem %s0, %s233
      %p235 = pneg %p38
      %p236 = pneg %p35
      %s237 = smul.u32 16, %s17
      %p238 = scmp.lt.s32.totalorder %s237, 31
      %s239 = scalar_select %p238, %s237, 31
      %s240 = smul.addr %s239, 8
      %s241 = scalar_lea.vmem %s1, %s240
      %p242 = pneg %p64
      %p243 = pneg %p61
      %p244 = pneg %p85
      %p245 = pneg %p82
      %p246 = pneg %p106
      %p247 = pneg %p103
      %p248 = pneg %p127
      %p249 = pneg %p124
      %p250 = pneg %p148
      %p251 = pneg %p145
      %p252 = pneg %p174
      %p253 = pneg %p171
      %p254 = scmp.lt.s32.totalorder %s17, 1
      %s255 = scalar_select %p254, %s17, 1
      %s256 = scalar_lea.vmem %s6, %s255
      %s257 = smul.u32 16, %s17
      %p258 = scmp.lt.s32.totalorder %s257, 31
      %s259 = scalar_select %p258, %s257, 31
      %s260 = smul.addr %s259, 4
      %s261 = scalar_lea.vmem %s0, %s260
      %s262 = smul.u32 16, %s17
      %s263 = smul.u32 16, %s17
      %p264 = scmp.lt.s32.totalorder %s263, 31
      %s265 = scalar_select %p264, %s263, 31
      %s266 = smul.addr %s265, 8
      %s267 = scalar_lea.vmem %s1, %s266
      %s268 = smul.u32 16, %s17
      %p269 = scmp.lt.s32.totalorder %s17, 1
      %s270 = scalar_select %p269, %s17, 1
      %s271 = scalar_lea.vmem %s6, %s270
      %v273 = vld [vmem:[%s261] sm:$0xf]
      %v274 = vld [vmem:[%s261 + $0x4] sm:$0xf]
      %v275 = vld [vmem:[%s261 + $0x8] sm:$0xf]
      %v276 = vld [vmem:[%s261 + $0xc] sm:$0xf]
      %v277 = vld [vmem:[%s261 + $0x10] sm:$0xf]
      %v278 = vld [vmem:[%s261 + $0x14] sm:$0xf]
      %v279 = vld [vmem:[%s261 + $0x18] sm:$0xf]
      %v280 = vld [vmem:[%s261 + $0x1c] sm:$0xf]
      %v281 = vld [vmem:[%s261 + $0x20] sm:$0xf]
      %v282 = vld [vmem:[%s261 + $0x24] sm:$0xf]
      %v283 = vld [vmem:[%s261 + $0x28] sm:$0xf]
      %v284 = vld [vmem:[%s261 + $0x2c] sm:$0xf]
      %v285 = vld [vmem:[%s261 + $0x30] sm:$0xf]
      %v286 = vld [vmem:[%s261 + $0x34] sm:$0xf]
      %v287 = vld [vmem:[%s261 + $0x38] sm:$0xf]
      %v288 = vld [vmem:[%s261 + $0x3c] sm:$0xf]
      %v289 = vld [vmem:[%s3] sm:$0x7]
      %v290 = vld [vmem:[%s2] sm:$0xf]
      %v291 = vld [vmem:[%s2 + $0x4] sm:$0xf]
      %v292 = vld [vmem:[%s2 + $0x8] sm:$0xf]
      %v293 = vld [vmem:[%s2 + $0xc] sm:$0xf]
      %v294 = vld [vmem:[%s2 + $0x10] sm:$0xf]
      %v295 = vld [vmem:[%s2 + $0x14] sm:$0xf]
      %v296 = vld [vmem:[%s2 + $0x18] sm:$0xf]
      %v297 = vld [vmem:[%s2 + $0x1c] sm:$0xf]
      %v298 = vld [vmem:[%s2 + $0x20] sm:$0xf]
      %v299 = vld [vmem:[%s2 + $0x24] sm:$0xf]
      %v300 = vld [vmem:[%s2 + $0x28] sm:$0xf]
      %v301 = vld [vmem:[%s2 + $0x2c] sm:$0xf]
      %v302 = vld [vmem:[%s2 + $0x30] sm:$0xf]
      %v303 = vld [vmem:[%s2 + $0x34] sm:$0xf]
      %v304 = vld [vmem:[%s2 + $0x38] sm:$0xf]
      %v305 = vld [vmem:[%s2 + $0x3c] sm:$0xf]
      %v306 = vlaneseq
      %v307 = vshrl.u32 %v306, 7
      %v308 = vsub.s32 0, %v307
      %v309 = vrot.slane %v289, %v308
      %v326 = vunpack.c.l.b16 %v273
      %v327 = vunpack.c.l.b16 %v274
      %v328 = vunpack.c.l.b16 %v275
      %v329 = vunpack.c.l.b16 %v276
      %v330 = vunpack.c.l.b16 %v277
      %v331 = vunpack.c.l.b16 %v278
      %v332 = vunpack.c.l.b16 %v279
      %v333 = vunpack.c.l.b16 %v280
      %v334 = vunpack.c.l.b16 %v281
      %v335 = vunpack.c.l.b16 %v282
      %v336 = vunpack.c.l.b16 %v283
      %v337 = vunpack.c.l.b16 %v284
      %v338 = vunpack.c.l.b16 %v285
      %v339 = vunpack.c.l.b16 %v286
      %v340 = vunpack.c.l.b16 %v287
      %v341 = vunpack.c.l.b16 %v288
      %v342 = vpack.c.b16 %v327, %v326
      %v343 = vpack.c.b16 %v329, %v328
      %v344 = vpack.c.b16 %v331, %v330
      %v345 = vpack.c.b16 %v333, %v332
      %v346 = vpack.c.b16 %v335, %v334
      %v347 = vpack.c.b16 %v337, %v336
      %v348 = vpack.c.b16 %v339, %v338
      %v349 = vpack.c.b16 %v341, %v340
      %v374 = vunpack.c.l.b16 %v290
      %v375 = vunpack.c.l.b16 %v291
      %v376 = vunpack.c.l.b16 %v292
      %v377 = vunpack.c.l.b16 %v293
      %v378 = vunpack.c.l.b16 %v294
      %v379 = vunpack.c.l.b16 %v295
      %v380 = vunpack.c.l.b16 %v296
      %v381 = vunpack.c.l.b16 %v297
      %v382 = vunpack.c.l.b16 %v298
      %v383 = vunpack.c.l.b16 %v299
      %v384 = vunpack.c.l.b16 %v300
      %v385 = vunpack.c.l.b16 %v301
      %v386 = vunpack.c.l.b16 %v302
      %v387 = vunpack.c.l.b16 %v303
      %v388 = vunpack.c.l.b16 %v304
      %v389 = vunpack.c.l.b16 %v305
      %v390 = vpack.c.b16 %v375, %v374
      %v391 = vpack.c.b16 %v377, %v376
      %v392 = vpack.c.b16 %v379, %v378
      %v393 = vpack.c.b16 %v381, %v380
      %v394 = vpack.c.b16 %v383, %v382
      %v395 = vpack.c.b16 %v385, %v384
      %v396 = vpack.c.b16 %v387, %v386
      %v397 = vpack.c.b16 %v389, %v388
      %406 = vmatprep.subr.bf16.mxu0 0
      %407 = vmatpush1.bf16.msra.mxu0 %v390
      %408 = vmatprep.subr.bf16.mxu0 0
      %409 = vmatpush1.bf16.msra.mxu0 %v391
      %410 = vmatprep.subr.bf16.mxu0 0
      %411 = vmatpush1.bf16.msra.mxu0 %v392
      %412 = vmatprep.subr.bf16.mxu0 0
      %413 = vmatpush1.bf16.msra.mxu0 %v393
      %414 = vmatprep.subr.bf16.mxu0 0
      %415 = vmatpush1.bf16.msra.mxu0 %v394
      %416 = vmatprep.subr.bf16.mxu0 0
      %417 = vmatpush1.bf16.msra.mxu0 %v395
      %418 = vmatprep.subr.bf16.mxu0 0
      %419 = vmatpush1.bf16.msra.mxu0 %v396
      %420 = vmatprep.subr.bf16.mxu0 0
      %421 = vmatpush1.bf16.msra.mxu0 %v397
      %422 = vmatprep.subr.bf16.mxu0 0
      %423 = vmatpush1.bf16.msra.mxu0 0
      %424 = vmatprep.subr.bf16.mxu0 0
      %425 = vmatpush1.bf16.msra.mxu0 0
      %426 = vmatprep.subr.bf16.mxu0 0
      %427 = vmatpush1.bf16.msra.mxu0 0
      %428 = vmatprep.subr.bf16.mxu0 0
      %429 = vmatpush1.bf16.msra.mxu0 0
      %430 = vmatprep.subr.bf16.mxu0 0
      %431 = vmatpush1.bf16.msra.mxu0 0
      %432 = vmatprep.subr.bf16.mxu0 0
      %433 = vmatpush1.bf16.msra.mxu0 0
      %434 = vmatprep.subr.bf16.mxu0 0
      %435 = vmatpush1.bf16.msra.mxu0 0
      %436 = vmatprep.subr.bf16.mxu0 0
      %437 = vmatpush1.bf16.msra.mxu0 0
      %438 = vmatprep.mubr.bf16.mxu0 0
      %439 = vmatmul.mubr.bf16.gmra.mrb[0].mxu0 %v342
      %v440 = vpop.f32.mrb[0].mxu0
      %v441 = vadd.f32 %v309, %v440
      %v442 = vpop.f32.mrb[0].mxu0
      %v443 = vpop.f32.mrb[0].mxu0
      %v444 = vadd.f32 %v309, %v443
      %v445 = vpop.f32.mrb[0].mxu0
      %446 = vmatprep.mubr.bf16.mxu0 0
      %447 = vmatmul.mubr.bf16.gmra.mrb[0].mxu0 %v343
      %v448 = vpop.f32.mrb[0].mxu0
      %v449 = vadd.f32 %v309, %v448
      %v450 = vpop.f32.mrb[0].mxu0
      %v451 = vpop.f32.mrb[0].mxu0
      %v452 = vadd.f32 %v309, %v451
      %v453 = vpop.f32.mrb[0].mxu0
      %454 = vmatprep.mubr.bf16.mxu0 0
      %455 = vmatmul.mubr.bf16.gmra.mrb[0].mxu0 %v344
      %v456 = vpop.f32.mrb[0].mxu0
      %v457 = vadd.f32 %v309, %v456
      %v458 = vpop.f32.mrb[0].mxu0
      %v459 = vpop.f32.mrb[0].mxu0
      %v460 = vadd.f32 %v309, %v459
      %v461 = vpop.f32.mrb[0].mxu0
      %462 = vmatprep.mubr.bf16.mxu0 0
      %463 = vmatmul.mubr.bf16.gmra.mrb[0].mxu0 %v345
      %v464 = vpop.f32.mrb[0].mxu0
      %v465 = vadd.f32 %v309, %v464
      %v466 = vpop.f32.mrb[0].mxu0
      %v467 = vpop.f32.mrb[0].mxu0
      %v468 = vadd.f32 %v309, %v467
      %v469 = vpop.f32.mrb[0].mxu0
      %470 = vmatprep.mubr.bf16.mxu0 0
      %471 = vmatmul.mubr.bf16.gmra.mrb[0].mxu0 %v346
      %v472 = vpop.f32.mrb[0].mxu0
      %v473 = vadd.f32 %v309, %v472
      %v474 = vpop.f32.mrb[0].mxu0
      %v475 = vpop.f32.mrb[0].mxu0
      %v476 = vadd.f32 %v309, %v475
      %v477 = vpop.f32.mrb[0].mxu0
      %478 = vmatprep.mubr.bf16.mxu0 0
      %479 = vmatmul.mubr.bf16.gmra.mrb[0].mxu0 %v347
      %v480 = vpop.f32.mrb[0].mxu0
      %v481 = vadd.f32 %v309, %v480
      %v482 = vpop.f32.mrb[0].mxu0
      %v483 = vpop.f32.mrb[0].mxu0
      %v484 = vadd.f32 %v309, %v483
      %v485 = vpop.f32.mrb[0].mxu0
      %486 = vmatprep.mubr.bf16.mxu0 0
      %487 = vmatmul.mubr.bf16.gmra.mrb[0].mxu0 %v348
      %v488 = vpop.f32.mrb[0].mxu0
      %v489 = vadd.f32 %v309, %v488
      %v490 = vpop.f32.mrb[0].mxu0
      %v491 = vpop.f32.mrb[0].mxu0
      %v492 = vadd.f32 %v309, %v491
      %v493 = vpop.f32.mrb[0].mxu0
      %494 = vmatprep.mubr.bf16.mxu0 0
      %495 = vmatmul.mubr.bf16.gmra.mrb[0].mxu0 %v349
      %v496 = vpop.f32.mrb[0].mxu0
      %v497 = vadd.f32 %v309, %v496
      %v498 = vpop.f32.mrb[0].mxu0
      %v499 = vpop.f32.mrb[0].mxu0
      %v500 = vadd.f32 %v309, %v499
      %v501 = vpop.f32.mrb[0].mxu0
      %502 = vdwg.mxu0
      %v503 = vmul.f32 %v441, 0.5
      %v504 = vmul.f32 %v444, 0.5
      %v505 = vmul.f32 %v449, 0.5
      %v506 = vmul.f32 %v452, 0.5
      %v507 = vmul.f32 %v457, 0.5
      %v508 = vmul.f32 %v460, 0.5
      %v509 = vmul.f32 %v465, 0.5
      %v510 = vmul.f32 %v468, 0.5
      %v511 = vmul.f32 %v473, 0.5
      %v512 = vmul.f32 %v476, 0.5
      %v513 = vmul.f32 %v481, 0.5
      %v514 = vmul.f32 %v484, 0.5
      %v515 = vmul.f32 %v489, 0.5
      %v516 = vmul.f32 %v492, 0.5
      %v517 = vmul.f32 %v497, 0.5
      %v518 = vmul.f32 %v500, 0.5
      %v519 = vmul.f32 %v441, 0.044715
      %v520 = vmul.f32 %v444, 0.044715
      %v521 = vmul.f32 %v449, 0.044715
      %v522 = vmul.f32 %v452, 0.044715
      %v523 = vmul.f32 %v457, 0.044715
      %v524 = vmul.f32 %v460, 0.044715
      %v525 = vmul.f32 %v465, 0.044715
      %v526 = vmul.f32 %v468, 0.044715
      %v527 = vmul.f32 %v473, 0.044715
      %v528 = vmul.f32 %v476, 0.044715
      %v529 = vmul.f32 %v481, 0.044715
      %v530 = vmul.f32 %v484, 0.044715
      %v531 = vmul.f32 %v489, 0.044715
      %v532 = vmul.f32 %v492, 0.044715
      %v533 = vmul.f32 %v497, 0.044715
      %v534 = vmul.f32 %v500, 0.044715
      %v535 = vmul.f32 %v519, %v441
      %v536 = vmul.f32 %v520, %v444
      %v537 = vmul.f32 %v521, %v449
      %v538 = vmul.f32 %v522, %v452
      %v539 = vmul.f32 %v523, %v457
      %v540 = vmul.f32 %v524, %v460
      %v541 = vmul.f32 %v525, %v465
      %v542 = vmul.f32 %v526, %v468
      %v543 = vmul.f32 %v527, %v473
      %v544 = vmul.f32 %v528, %v476
      %v545 = vmul.f32 %v529, %v481
      %v546 = vmul.f32 %v530, %v484
      %v547 = vmul.f32 %v531, %v489
      %v548 = vmul.f32 %v532, %v492
      %v549 = vmul.f32 %v533, %v497
      %v550 = vmul.f32 %v534, %v500
      %v551 = vmul.f32 %v535, %v441
      %v552 = vmul.f32 %v536, %v444
      %v553 = vmul.f32 %v537, %v449
      %v554 = vmul.f32 %v538, %v452
      %v555 = vmul.f32 %v539, %v457
      %v556 = vmul.f32 %v540, %v460
      %v557 = vmul.f32 %v541, %v465
      %v558 = vmul.f32 %v542, %v468
      %v559 = vmul.f32 %v543, %v473
      %v560 = vmul.f32 %v544, %v476
      %v561 = vmul.f32 %v545, %v481
      %v562 = vmul.f32 %v546, %v484
      %v563 = vmul.f32 %v547, %v489
      %v564 = vmul.f32 %v548, %v492
      %v565 = vmul.f32 %v549, %v497
      %v566 = vmul.f32 %v550, %v500
      %v567 = vadd.f32 %v441, %v551
      %v568 = vadd.f32 %v444, %v552
      %v569 = vadd.f32 %v449, %v553
      %v570 = vadd.f32 %v452, %v554
      %v571 = vadd.f32 %v457, %v555
      %v572 = vadd.f32 %v460, %v556
      %v573 = vadd.f32 %v465, %v557
      %v574 = vadd.f32 %v468, %v558
      %v575 = vadd.f32 %v473, %v559
      %v576 = vadd.f32 %v476, %v560
      %v577 = vadd.f32 %v481, %v561
      %v578 = vadd.f32 %v484, %v562
      %v579 = vadd.f32 %v489, %v563
      %v580 = vadd.f32 %v492, %v564
      %v581 = vadd.f32 %v497, %v565
      %v582 = vadd.f32 %v500, %v566
      %v583 = vmul.f32 %v567, 0.7978846
      %v584 = vmul.f32 %v568, 0.7978846
      %v585 = vmul.f32 %v569, 0.7978846
      %v586 = vmul.f32 %v570, 0.7978846
      %v587 = vmul.f32 %v571, 0.7978846
      %v588 = vmul.f32 %v572, 0.7978846
      %v589 = vmul.f32 %v573, 0.7978846
      %v590 = vmul.f32 %v574, 0.7978846
      %v591 = vmul.f32 %v575, 0.7978846
      %v592 = vmul.f32 %v576, 0.7978846
      %v593 = vmul.f32 %v577, 0.7978846
      %v594 = vmul.f32 %v578, 0.7978846
      %v595 = vmul.f32 %v579, 0.7978846
      %v596 = vmul.f32 %v580, 0.7978846
      %v597 = vmul.f32 %v581, 0.7978846
      %v598 = vmul.f32 %v582, 0.7978846
      %v599 = vtanh.pop %v583
      %v600 = vtanh.pop %v584
      %v601 = vtanh.pop %v585
      %v602 = vtanh.pop %v586
      %v603 = vtanh.pop %v587
      %v604 = vtanh.pop %v588
      %v605 = vtanh.pop %v589
      %v606 = vtanh.pop %v590
      %v607 = vtanh.pop %v591
      %v608 = vtanh.pop %v592
      %v609 = vtanh.pop %v593
      %v610 = vtanh.pop %v594
      %v611 = vtanh.pop %v595
      %v612 = vtanh.pop %v596
      %v613 = vtanh.pop %v597
      %v614 = vtanh.pop %v598
      %v615 = vadd.f32 %v599, 1.0
      %v616 = vadd.f32 %v600, 1.0
      %v617 = vadd.f32 %v601, 1.0
      %v618 = vadd.f32 %v602, 1.0
      %v619 = vadd.f32 %v603, 1.0
      %v620 = vadd.f32 %v604, 1.0
      %v621 = vadd.f32 %v605, 1.0
      %v622 = vadd.f32 %v606, 1.0
      %v623 = vadd.f32 %v607, 1.0
      %v624 = vadd.f32 %v608, 1.0
      %v625 = vadd.f32 %v609, 1.0
      %v626 = vadd.f32 %v610, 1.0
      %v627 = vadd.f32 %v611, 1.0
      %v628 = vadd.f32 %v612, 1.0
      %v629 = vadd.f32 %v613, 1.0
      %v630 = vadd.f32 %v614, 1.0
      %v631 = vmul.f32 %v503, %v615
      %v632 = vmul.f32 %v504, %v616
      %v633 = vmul.f32 %v505, %v617
      %v634 = vmul.f32 %v506, %v618
      %v635 = vmul.f32 %v507, %v619
      %v636 = vmul.f32 %v508, %v620
      %v637 = vmul.f32 %v509, %v621
      %v638 = vmul.f32 %v510, %v622
      %v639 = vmul.f32 %v511, %v623
      %v640 = vmul.f32 %v512, %v624
      %v641 = vmul.f32 %v513, %v625
      %v642 = vmul.f32 %v514, %v626
      %v643 = vmul.f32 %v515, %v627
      %v644 = vmul.f32 %v516, %v628
      %v645 = vmul.f32 %v517, %v629
      %v646 = vmul.f32 %v518, %v630
      %647 = vadd.xlane.f32.xlu0 %v631
      %v648 = vpop.xlane.xlu0 %647
      %649 = vadd.xlane.f32.xlu0 %v632
      %v650 = vpop.xlane.xlu0 %649
      %651 = vadd.xlane.f32.xlu0 %v633
      %v652 = vpop.xlane.xlu0 %651
      %653 = vadd.xlane.f32.xlu0 %v634
      %v654 = vpop.xlane.xlu0 %653
      %655 = vadd.xlane.f32.xlu0 %v635
      %v656 = vpop.xlane.xlu0 %655
      %657 = vadd.xlane.f32.xlu0 %v636
      %v658 = vpop.xlane.xlu0 %657
      %659 = vadd.xlane.f32.xlu0 %v637
      %v660 = vpop.xlane.xlu0 %659
      %661 = vadd.xlane.f32.xlu0 %v638
      %v662 = vpop.xlane.xlu0 %661
      %663 = vadd.xlane.f32.xlu0 %v639
      %v664 = vpop.xlane.xlu0 %663
      %665 = vadd.xlane.f32.xlu0 %v640
      %v666 = vpop.xlane.xlu0 %665
      %667 = vadd.xlane.f32.xlu0 %v641
      %v668 = vpop.xlane.xlu0 %667
      %669 = vadd.xlane.f32.xlu0 %v642
      %v670 = vpop.xlane.xlu0 %669
      %671 = vadd.xlane.f32.xlu0 %v643
      %v672 = vpop.xlane.xlu0 %671
      %673 = vadd.xlane.f32.xlu0 %v644
      %v674 = vpop.xlane.xlu0 %673
      %675 = vadd.xlane.f32.xlu0 %v645
      %v676 = vpop.xlane.xlu0 %675
      %677 = vadd.xlane.f32.xlu0 %v646
      %v678 = vpop.xlane.xlu0 %677
      %v679 = vrcp.pop 128.0
      %v680 = vmul.f32 %v648, %v679
      %v681 = vmul.f32 %v650, %v679
      %v682 = vmul.f32 %v652, %v679
      %v683 = vmul.f32 %v654, %v679
      %v684 = vmul.f32 %v656, %v679
      %v685 = vmul.f32 %v658, %v679
      %v686 = vmul.f32 %v660, %v679
      %v687 = vmul.f32 %v662, %v679
      %v688 = vmul.f32 %v664, %v679
      %v689 = vmul.f32 %v666, %v679
      %v690 = vmul.f32 %v668, %v679
      %v691 = vmul.f32 %v670, %v679
      %v692 = vmul.f32 %v672, %v679
      %v693 = vmul.f32 %v674, %v679
      %v694 = vmul.f32 %v676, %v679
      %v695 = vmul.f32 %v678, %v679
      %v696 = vsub.f32 %v631, %v680
      %v697 = vsub.f32 %v632, %v681
      %v698 = vsub.f32 %v633, %v682
      %v699 = vsub.f32 %v634, %v683
      %v700 = vsub.f32 %v635, %v684
      %v701 = vsub.f32 %v636, %v685
      %v702 = vsub.f32 %v637, %v686
      %v703 = vsub.f32 %v638, %v687
      %v704 = vsub.f32 %v639, %v688
      %v705 = vsub.f32 %v640, %v689
      %v706 = vsub.f32 %v641, %v690
      %v707 = vsub.f32 %v642, %v691
      %v708 = vsub.f32 %v643, %v692
      %v709 = vsub.f32 %v644, %v693
      %v710 = vsub.f32 %v645, %v694
      %v711 = vsub.f32 %v646, %v695
      %v712 = vmul.f32 %v696, %v696
      %v713 = vmul.f32 %v697, %v697
      %v714 = vmul.f32 %v698, %v698
      %v715 = vmul.f32 %v699, %v699
      %v716 = vmul.f32 %v700, %v700
      %v717 = vmul.f32 %v701, %v701
      %v718 = vmul.f32 %v702, %v702
      %v719 = vmul.f32 %v703, %v703
      %v720 = vmul.f32 %v704, %v704
      %v721 = vmul.f32 %v705, %v705
      %v722 = vmul.f32 %v706, %v706
      %v723 = vmul.f32 %v707, %v707
      %v724 = vmul.f32 %v708, %v708
      %v725 = vmul.f32 %v709, %v709
      %v726 = vmul.f32 %v710, %v710
      %v727 = vmul.f32 %v711, %v711
      %728 = vadd.xlane.f32.xlu0 %v712
      %v729 = vpop.xlane.xlu0 %728
      %730 = vadd.xlane.f32.xlu0 %v713
      %v731 = vpop.xlane.xlu0 %730
      %732 = vadd.xlane.f32.xlu0 %v714
      %v733 = vpop.xlane.xlu0 %732
      %734 = vadd.xlane.f32.xlu0 %v715
      %v735 = vpop.xlane.xlu0 %734
      %736 = vadd.xlane.f32.xlu0 %v716
      %v737 = vpop.xlane.xlu0 %736
      %738 = vadd.xlane.f32.xlu0 %v717
      %v739 = vpop.xlane.xlu0 %738
      %740 = vadd.xlane.f32.xlu0 %v718
      %v741 = vpop.xlane.xlu0 %740
      %742 = vadd.xlane.f32.xlu0 %v719
      %v743 = vpop.xlane.xlu0 %742
      %744 = vadd.xlane.f32.xlu0 %v720
      %v745 = vpop.xlane.xlu0 %744
      %746 = vadd.xlane.f32.xlu0 %v721
      %v747 = vpop.xlane.xlu0 %746
      %748 = vadd.xlane.f32.xlu0 %v722
      %v749 = vpop.xlane.xlu0 %748
      %750 = vadd.xlane.f32.xlu0 %v723
      %v751 = vpop.xlane.xlu0 %750
      %752 = vadd.xlane.f32.xlu0 %v724
      %v753 = vpop.xlane.xlu0 %752
      %754 = vadd.xlane.f32.xlu0 %v725
      %v755 = vpop.xlane.xlu0 %754
      %756 = vadd.xlane.f32.xlu0 %v726
      %v757 = vpop.xlane.xlu0 %756
      %758 = vadd.xlane.f32.xlu0 %v727
      %v759 = vpop.xlane.xlu0 %758
      %v760 = vmul.f32 %v729, %v679
      %v761 = vmul.f32 %v731, %v679
      %v762 = vmul.f32 %v733, %v679
      %v763 = vmul.f32 %v735, %v679
      %v764 = vmul.f32 %v737, %v679
      %v765 = vmul.f32 %v739, %v679
      %v766 = vmul.f32 %v741, %v679
      %v767 = vmul.f32 %v743, %v679
      %v768 = vmul.f32 %v745, %v679
      %v769 = vmul.f32 %v747, %v679
      %v770 = vmul.f32 %v749, %v679
      %v771 = vmul.f32 %v751, %v679
      %v772 = vmul.f32 %v753, %v679
      %v773 = vmul.f32 %v755, %v679
      %v774 = vmul.f32 %v757, %v679
      %v775 = vmul.f32 %v759, %v679
      %v776 = vadd.f32 %v760, 1e-12
      %v777 = vadd.f32 %v761, 1e-12
      %v778 = vadd.f32 %v762, 1e-12
      %v779 = vadd.f32 %v763, 1e-12
      %v780 = vadd.f32 %v764, 1e-12
      %v781 = vadd.f32 %v765, 1e-12
      %v782 = vadd.f32 %v766, 1e-12
      %v783 = vadd.f32 %v767, 1e-12
      %v784 = vadd.f32 %v768, 1e-12
      %v785 = vadd.f32 %v769, 1e-12
      %v786 = vadd.f32 %v770, 1e-12
      %v787 = vadd.f32 %v771, 1e-12
      %v788 = vadd.f32 %v772, 1e-12
      %v789 = vadd.f32 %v773, 1e-12
      %v790 = vadd.f32 %v774, 1e-12
      %v791 = vadd.f32 %v775, 1e-12
      %v792 = vrsqrt.pop %v776
      %v793 = vrsqrt.pop %v777
      %v794 = vrsqrt.pop %v778
      %v795 = vrsqrt.pop %v779
      %v796 = vrsqrt.pop %v780
      %v797 = vrsqrt.pop %v781
      %v798 = vrsqrt.pop %v782
      %v799 = vrsqrt.pop %v783
      %v800 = vrsqrt.pop %v784
      %v801 = vrsqrt.pop %v785
      %v802 = vrsqrt.pop %v786
      %v803 = vrsqrt.pop %v787
      %v804 = vrsqrt.pop %v788
      %v805 = vrsqrt.pop %v789
      %v806 = vrsqrt.pop %v790
      %v807 = vrsqrt.pop %v791
      %v808 = vmul.f32 %v696, %v792
      %v809 = vmul.f32 %v697, %v793
      %v810 = vmul.f32 %v698, %v794
      %v811 = vmul.f32 %v699, %v795
      %v812 = vmul.f32 %v700, %v796
      %v813 = vmul.f32 %v701, %v797
      %v814 = vmul.f32 %v702, %v798
      %v815 = vmul.f32 %v703, %v799
      %v816 = vmul.f32 %v704, %v800
      %v817 = vmul.f32 %v705, %v801
      %v818 = vmul.f32 %v706, %v802
      %v819 = vmul.f32 %v707, %v803
      %v820 = vmul.f32 %v708, %v804
      %v821 = vmul.f32 %v709, %v805
      %v822 = vmul.f32 %v710, %v806
      %v823 = vmul.f32 %v711, %v807
      %v824 = vlaneseq
      %v825 = vshrl.u32 %v824, 7
      %v826 = vsub.s32 1, %v825
      %v827 = vrot.slane %v289, %v826
      %v828 = vmul.f32 %v808, %v827
      %v829 = vmul.f32 %v809, %v827
      %v830 = vmul.f32 %v810, %v827
      %v831 = vmul.f32 %v811, %v827
      %v832 = vmul.f32 %v812, %v827
      %v833 = vmul.f32 %v813, %v827
      %v834 = vmul.f32 %v814, %v827
      %v835 = vmul.f32 %v815, %v827
      %v836 = vmul.f32 %v816, %v827
      %v837 = vmul.f32 %v817, %v827
      %v838 = vmul.f32 %v818, %v827
      %v839 = vmul.f32 %v819, %v827
      %v840 = vmul.f32 %v820, %v827
      %v841 = vmul.f32 %v821, %v827
      %v842 = vmul.f32 %v822, %v827
      %v843 = vmul.f32 %v823, %v827
      %v844 = vlaneseq
      %v845 = vshrl.u32 %v844, 7
      %v846 = vsub.s32 2, %v845
      %v847 = vrot.slane %v289, %v846
      %v848 = vadd.f32 %v828, %v847
      %v849 = vadd.f32 %v829, %v847
      %v850 = vadd.f32 %v830, %v847
      %v851 = vadd.f32 %v831, %v847
      %v852 = vadd.f32 %v832, %v847
      %v853 = vadd.f32 %v833, %v847
      %v854 = vadd.f32 %v834, %v847
      %v855 = vadd.f32 %v835, %v847
      %v856 = vadd.f32 %v836, %v847
      %v857 = vadd.f32 %v837, %v847
      %v858 = vadd.f32 %v838, %v847
      %v859 = vadd.f32 %v839, %v847
      %v860 = vadd.f32 %v840, %v847
      %v861 = vadd.f32 %v841, %v847
      %v862 = vadd.f32 %v842, %v847
      %v863 = vadd.f32 %v843, %v847
      %v864 = vpack.c.bf16 %v849, %v848
      %v865 = vpack.c.bf16 %v851, %v850
      %v866 = vpack.c.bf16 %v853, %v852
      %v867 = vpack.c.bf16 %v855, %v854
      %v868 = vpack.c.bf16 %v857, %v856
      %v869 = vpack.c.bf16 %v859, %v858
      %v870 = vpack.c.bf16 %v861, %v860
      %v871 = vpack.c.bf16 %v863, %v862
      %v872 = vld [vmem:[%s4] sm:$0xff]
      %v873 = vld [vmem:[%s4 + $0x8] sm:$0xff]
      %v874 = vld [vmem:[%s4 + $0x10] sm:$0xff]
      %v875 = vld [vmem:[%s4 + $0x18] sm:$0xff]
      %v876 = vld [vmem:[%s4 + $0x20] sm:$0xff]
      %v877 = vld [vmem:[%s4 + $0x28] sm:$0xff]
      %v878 = vld [vmem:[%s4 + $0x30] sm:$0xff]
      %v879 = vld [vmem:[%s4 + $0x38] sm:$0xff]
      %v880 = vld [vmem:[%s4 + $0x40] sm:$0xff]
      %v881 = vld [vmem:[%s4 + $0x48] sm:$0xff]
      %v882 = vld [vmem:[%s4 + $0x50] sm:$0xff]
      %v883 = vld [vmem:[%s4 + $0x58] sm:$0xff]
      %v884 = vld [vmem:[%s4 + $0x60] sm:$0xff]
      %v885 = vld [vmem:[%s4 + $0x68] sm:$0xff]
      %v886 = vld [vmem:[%s4 + $0x70] sm:$0xff]
      %v887 = vld [vmem:[%s4 + $0x78] sm:$0xff]
      %v888 = vld [vmem:[%s4 + $0x80] sm:$0xff]
      %v889 = vld [vmem:[%s4 + $0x88] sm:$0xff]
      %v890 = vld [vmem:[%s4 + $0x90] sm:$0xff]
      %v891 = vld [vmem:[%s4 + $0x98] sm:$0xff]
      %v892 = vld [vmem:[%s4 + $0xa0] sm:$0xff]
      %v893 = vld [vmem:[%s4 + $0xa8] sm:$0xff]
      %v894 = vld [vmem:[%s4 + $0xb0] sm:$0xff]
      %v895 = vld [vmem:[%s4 + $0xb8] sm:$0xff]
      %v896 = vld [vmem:[%s4 + $0xc0] sm:$0xff]
      %v897 = vld [vmem:[%s4 + $0xc8] sm:$0xff]
      %v898 = vld [vmem:[%s4 + $0xd0] sm:$0xff]
      %v899 = vld [vmem:[%s4 + $0xd8] sm:$0xff]
      %v900 = vld [vmem:[%s4 + $0xe0] sm:$0xff]
      %v901 = vld [vmem:[%s4 + $0xe8] sm:$0xff]
      %v902 = vld [vmem:[%s4 + $0xf0] sm:$0xff]
      %v903 = vld [vmem:[%s4 + $0xf8] sm:$0xff]
      %v904 = vld [vmem:[%s5] sm:$0xf]
      %v906 = vlaneseq
      %v907 = vshrl.u32 %v906, 7
      %v908 = vsub.s32 0, %v907
      %v909 = vrot.slane %v904, %v908
      %v910 = vlaneseq
      %v911 = vshrl.u32 %v910, 7
      %v912 = vsub.s32 1, %v911
      %v913 = vrot.slane %v904, %v912
      %v914 = vlaneseq
      %v915 = vshrl.u32 %v914, 7
      %v916 = vsub.s32 2, %v915
      %v917 = vrot.slane %v904, %v916
      %v918 = vlaneseq
      %v919 = vshrl.u32 %v918, 7
      %v920 = vsub.s32 3, %v919
      %v921 = vrot.slane %v904, %v920
      %v958 = vunpack.c.l.b16 %v872
      %v959 = vunpack.c.h.b16 %v872
      %v960 = vunpack.c.l.b16 %v873
      %v961 = vunpack.c.h.b16 %v873
      %v962 = vunpack.c.l.b16 %v874
      %v963 = vunpack.c.h.b16 %v874
      %v964 = vunpack.c.l.b16 %v875
      %v965 = vunpack.c.h.b16 %v875
      %v966 = vunpack.c.l.b16 %v876
      %v967 = vunpack.c.h.b16 %v876
      %v968 = vunpack.c.l.b16 %v877
      %v969 = vunpack.c.h.b16 %v877
      %v970 = vunpack.c.l.b16 %v878
      %v971 = vunpack.c.h.b16 %v878
      %v972 = vunpack.c.l.b16 %v879
      %v973 = vunpack.c.h.b16 %v879
      %v974 = vunpack.c.l.b16 %v880
      %v975 = vunpack.c.h.b16 %v880
      %v976 = vunpack.c.l.b16 %v881
      %v977 = vunpack.c.h.b16 %v881
      %v978 = vunpack.c.l.b16 %v882
      %v979 = vunpack.c.h.b16 %v882
      %v980 = vunpack.c.l.b16 %v883
      %v981 = vunpack.c.h.b16 %v883
      %v982 = vunpack.c.l.b16 %v884
      %v983 = vunpack.c.h.b16 %v884
      %v984 = vunpack.c.l.b16 %v885
      %v985 = vunpack.c.h.b16 %v885
      %v986 = vunpack.c.l.b16 %v886
      %v987 = vunpack.c.h.b16 %v886
      %v988 = vunpack.c.l.b16 %v887
      %v989 = vunpack.c.h.b16 %v887
      %v990 = vunpack.c.l.b16 %v888
      %v991 = vunpack.c.h.b16 %v888
      %v992 = vunpack.c.l.b16 %v889
      %v993 = vunpack.c.h.b16 %v889
      %v994 = vunpack.c.l.b16 %v890
      %v995 = vunpack.c.h.b16 %v890
      %v996 = vunpack.c.l.b16 %v891
      %v997 = vunpack.c.h.b16 %v891
      %v998 = vunpack.c.l.b16 %v892
      %v999 = vunpack.c.h.b16 %v892
      %v1000 = vunpack.c.l.b16 %v893
      %v1001 = vunpack.c.h.b16 %v893
      %v1002 = vunpack.c.l.b16 %v894
      %v1003 = vunpack.c.h.b16 %v894
      %v1004 = vunpack.c.l.b16 %v895
      %v1005 = vunpack.c.h.b16 %v895
      %v1006 = vunpack.c.l.b16 %v896
      %v1007 = vunpack.c.h.b16 %v896
      %v1008 = vunpack.c.l.b16 %v897
      %v1009 = vunpack.c.h.b16 %v897
      %v1010 = vunpack.c.l.b16 %v898
      %v1011 = vunpack.c.h.b16 %v898
      %v1012 = vunpack.c.l.b16 %v899
      %v1013 = vunpack.c.h.b16 %v899
      %v1014 = vunpack.c.l.b16 %v900
      %v1015 = vunpack.c.h.b16 %v900
      %v1016 = vunpack.c.l.b16 %v901
      %v1017 = vunpack.c.h.b16 %v901
      %v1018 = vunpack.c.l.b16 %v902
      %v1019 = vunpack.c.h.b16 %v902
      %v1020 = vunpack.c.l.b16 %v903
      %v1021 = vunpack.c.h.b16 %v903
      %v1022 = vpack.c.b16 %v962, %v958
      %v1023 = vpack.c.b16 %v963, %v959
      %v1024 = vpack.c.b16 %v964, %v960
      %v1025 = vpack.c.b16 %v965, %v961
      %v1026 = vpack.c.b16 %v970, %v966
      %v1027 = vpack.c.b16 %v971, %v967
      %v1028 = vpack.c.b16 %v972, %v968
      %v1029 = vpack.c.b16 %v973, %v969
      %v1030 = vpack.c.b16 %v978, %v974
      %v1031 = vpack.c.b16 %v979, %v975
      %v1032 = vpack.c.b16 %v980, %v976
      %v1033 = vpack.c.b16 %v981, %v977
      %v1034 = vpack.c.b16 %v986, %v982
      %v1035 = vpack.c.b16 %v987, %v983
      %v1036 = vpack.c.b16 %v988, %v984
      %v1037 = vpack.c.b16 %v989, %v985
      %v1038 = vpack.c.b16 %v994, %v990
      %v1039 = vpack.c.b16 %v995, %v991
      %v1040 = vpack.c.b16 %v996, %v992
      %v1041 = vpack.c.b16 %v997, %v993
      %v1042 = vpack.c.b16 %v1002, %v998
      %v1043 = vpack.c.b16 %v1003, %v999
      %v1044 = vpack.c.b16 %v1004, %v1000
      %v1045 = vpack.c.b16 %v1005, %v1001
      %v1046 = vpack.c.b16 %v1010, %v1006
      %v1047 = vpack.c.b16 %v1011, %v1007
      %v1048 = vpack.c.b16 %v1012, %v1008
      %v1049 = vpack.c.b16 %v1013, %v1009
      %v1050 = vpack.c.b16 %v1018, %v1014
      %v1051 = vpack.c.b16 %v1019, %v1015
      %v1052 = vpack.c.b16 %v1020, %v1016
      %v1053 = vpack.c.b16 %v1021, %v1017
      %1086 = vmatprep.subr.bf16.mxu0 %v1023
      %1087 = vmatpush1.bf16.msra.mxu0 %v1022
      %1088 = vmatprep.subr.bf16.mxu0 %v1027
      %1089 = vmatpush1.bf16.msra.mxu0 %v1026
      %1090 = vmatprep.subr.bf16.mxu0 %v1031
      %1091 = vmatpush1.bf16.msra.mxu0 %v1030
      %1092 = vmatprep.subr.bf16.mxu0 %v1035
      %1093 = vmatpush1.bf16.msra.mxu0 %v1034
      %1094 = vmatprep.subr.bf16.mxu0 %v1039
      %1095 = vmatpush1.bf16.msra.mxu0 %v1038
      %1096 = vmatprep.subr.bf16.mxu0 %v1043
      %1097 = vmatpush1.bf16.msra.mxu0 %v1042
      %1098 = vmatprep.subr.bf16.mxu0 %v1047
      %1099 = vmatpush1.bf16.msra.mxu0 %v1046
      %1100 = vmatprep.subr.bf16.mxu0 %v1051
      %1101 = vmatpush1.bf16.msra.mxu0 %v1050
      %1102 = vmatprep.subr.bf16.mxu0 0
      %1103 = vmatpush1.bf16.msra.mxu0 0
      %1104 = vmatprep.subr.bf16.mxu0 0
      %1105 = vmatpush1.bf16.msra.mxu0 0
      %1106 = vmatprep.subr.bf16.mxu0 0
      %1107 = vmatpush1.bf16.msra.mxu0 0
      %1108 = vmatprep.subr.bf16.mxu0 0
      %1109 = vmatpush1.bf16.msra.mxu0 0
      %1110 = vmatprep.subr.bf16.mxu0 0
      %1111 = vmatpush1.bf16.msra.mxu0 0
      %1112 = vmatprep.subr.bf16.mxu0 0
      %1113 = vmatpush1.bf16.msra.mxu0 0
      %1114 = vmatprep.subr.bf16.mxu0 0
      %1115 = vmatpush1.bf16.msra.mxu0 0
      %1116 = vmatprep.subr.bf16.mxu0 0
      %1117 = vmatpush1.bf16.msra.mxu0 0
      %1118 = vmatprep.mubr.bf16.mxu0 0
      %1119 = vmatmul.mubr.bf16.gmra.mrb[0].mxu0 %v864
      %v1120 = vpop.f32.mrb[0].mxu0
      %v1121 = vadd.f32 %v909, %v1120
      %v1122 = vpop.f32.mrb[0].mxu0
      %v1123 = vadd.f32 %v913, %v1122
      %v1124 = vpop.f32.mrb[0].mxu0
      %v1125 = vadd.f32 %v909, %v1124
      %v1126 = vpop.f32.mrb[0].mxu0
      %v1127 = vadd.f32 %v913, %v1126
      %1128 = vmatprep.mubr.bf16.mxu0 0
      %1129 = vmatmul.mubr.bf16.gmra.mrb[0].mxu0 %v865
      %v1130 = vpop.f32.mrb[0].mxu0
      %v1131 = vadd.f32 %v909, %v1130
      %v1132 = vpop.f32.mrb[0].mxu0
      %v1133 = vadd.f32 %v913, %v1132
      %v1134 = vpop.f32.mrb[0].mxu0
      %v1135 = vadd.f32 %v909, %v1134
      %v1136 = vpop.f32.mrb[0].mxu0
      %v1137 = vadd.f32 %v913, %v1136
      %1138 = vmatprep.mubr.bf16.mxu0 0
      %1139 = vmatmul.mubr.bf16.gmra.mrb[0].mxu0 %v866
      %v1140 = vpop.f32.mrb[0].mxu0
      %v1141 = vadd.f32 %v909, %v1140
      %v1142 = vpop.f32.mrb[0].mxu0
      %v1143 = vadd.f32 %v913, %v1142
      %v1144 = vpop.f32.mrb[0].mxu0
      %v1145 = vadd.f32 %v909, %v1144
      %v1146 = vpop.f32.mrb[0].mxu0
      %v1147 = vadd.f32 %v913, %v1146
      %1148 = vmatprep.mubr.bf16.mxu0 0
      %1149 = vmatmul.mubr.bf16.gmra.mrb[0].mxu0 %v867
      %v1150 = vpop.f32.mrb[0].mxu0
      %v1151 = vadd.f32 %v909, %v1150
      %v1152 = vpop.f32.mrb[0].mxu0
      %v1153 = vadd.f32 %v913, %v1152
      %v1154 = vpop.f32.mrb[0].mxu0
      %v1155 = vadd.f32 %v909, %v1154
      %v1156 = vpop.f32.mrb[0].mxu0
      %v1157 = vadd.f32 %v913, %v1156
      %1158 = vmatprep.mubr.bf16.mxu0 0
      %1159 = vmatmul.mubr.bf16.gmra.mrb[0].mxu0 %v868
      %v1160 = vpop.f32.mrb[0].mxu0
      %v1161 = vadd.f32 %v909, %v1160
      %v1162 = vpop.f32.mrb[0].mxu0
      %v1163 = vadd.f32 %v913, %v1162
      %v1164 = vpop.f32.mrb[0].mxu0
      %v1165 = vadd.f32 %v909, %v1164
      %v1166 = vpop.f32.mrb[0].mxu0
      %v1167 = vadd.f32 %v913, %v1166
      %1168 = vmatprep.mubr.bf16.mxu0 0
      %1169 = vmatmul.mubr.bf16.gmra.mrb[0].mxu0 %v869
      %v1170 = vpop.f32.mrb[0].mxu0
      %v1171 = vadd.f32 %v909, %v1170
      %v1172 = vpop.f32.mrb[0].mxu0
      %v1173 = vadd.f32 %v913, %v1172
      %v1174 = vpop.f32.mrb[0].mxu0
      %v1175 = vadd.f32 %v909, %v1174
      %v1176 = vpop.f32.mrb[0].mxu0
      %v1177 = vadd.f32 %v913, %v1176
      %1178 = vmatprep.mubr.bf16.mxu0 0
      %1179 = vmatmul.mubr.bf16.gmra.mrb[0].mxu0 %v870
      %v1180 = vpop.f32.mrb[0].mxu0
      %v1181 = vadd.f32 %v909, %v1180
      %v1182 = vpop.f32.mrb[0].mxu0
      %v1183 = vadd.f32 %v913, %v1182
      %v1184 = vpop.f32.mrb[0].mxu0
      %v1185 = vadd.f32 %v909, %v1184
      %v1186 = vpop.f32.mrb[0].mxu0
      %v1187 = vadd.f32 %v913, %v1186
      %1188 = vmatprep.mubr.bf16.mxu0 0
      %1189 = vmatmul.mubr.bf16.gmra.mrb[0].mxu0 %v871
      %v1190 = vpop.f32.mrb[0].mxu0
      %v1191 = vadd.f32 %v909, %v1190
      %v1192 = vpop.f32.mrb[0].mxu0
      %v1193 = vadd.f32 %v913, %v1192
      %v1194 = vpop.f32.mrb[0].mxu0
      %v1195 = vadd.f32 %v909, %v1194
      %v1196 = vpop.f32.mrb[0].mxu0
      %v1197 = vadd.f32 %v913, %v1196
      %1198 = vdwg.mxu0
      %1199 = vmatprep.subr.bf16.mxu0 %v1025
      %1200 = vmatpush1.bf16.msra.mxu0 %v1024
      %1201 = vmatprep.subr.bf16.mxu0 %v1029
      %1202 = vmatpush1.bf16.msra.mxu0 %v1028
      %1203 = vmatprep.subr.bf16.mxu0 %v1033
      %1204 = vmatpush1.bf16.msra.mxu0 %v1032
      %1205 = vmatprep.subr.bf16.mxu0 %v1037
      %1206 = vmatpush1.bf16.msra.mxu0 %v1036
      %1207 = vmatprep.subr.bf16.mxu0 %v1041
      %1208 = vmatpush1.bf16.msra.mxu0 %v1040
      %1209 = vmatprep.subr.bf16.mxu0 %v1045
      %1210 = vmatpush1.bf16.msra.mxu0 %v1044
      %1211 = vmatprep.subr.bf16.mxu0 %v1049
      %1212 = vmatpush1.bf16.msra.mxu0 %v1048
      %1213 = vmatprep.subr.bf16.mxu0 %v1053
      %1214 = vmatpush1.bf16.msra.mxu0 %v1052
      %1215 = vmatprep.subr.bf16.mxu0 0
      %1216 = vmatpush1.bf16.msra.mxu0 0
      %1217 = vmatprep.subr.bf16.mxu0 0
      %1218 = vmatpush1.bf16.msra.mxu0 0
      %1219 = vmatprep.subr.bf16.mxu0 0
      %1220 = vmatpush1.bf16.msra.mxu0 0
      %1221 = vmatprep.subr.bf16.mxu0 0
      %1222 = vmatpush1.bf16.msra.mxu0 0
      %1223 = vmatprep.subr.bf16.mxu0 0
      %1224 = vmatpush1.bf16.msra.mxu0 0
      %1225 = vmatprep.subr.bf16.mxu0 0
      %1226 = vmatpush1.bf16.msra.mxu0 0
      %1227 = vmatprep.subr.bf16.mxu0 0
      %1228 = vmatpush1.bf16.msra.mxu0 0
      %1229 = vmatprep.subr.bf16.mxu0 0
      %1230 = vmatpush1.bf16.msra.mxu0 0
      %1231 = vmatprep.mubr.bf16.mxu0 0
      %1232 = vmatmul.mubr.bf16.gmra.mrb[0].mxu0 %v864
      %v1233 = vpop.f32.mrb[0].mxu0
      %v1234 = vadd.f32 %v917, %v1233
      %v1235 = vpop.f32.mrb[0].mxu0
      %v1236 = vadd.f32 %v921, %v1235
      %v1237 = vpop.f32.mrb[0].mxu0
      %v1238 = vadd.f32 %v917, %v1237
      %v1239 = vpop.f32.mrb[0].mxu0
      %v1240 = vadd.f32 %v921, %v1239
      %1241 = vmatprep.mubr.bf16.mxu0 0
      %1242 = vmatmul.mubr.bf16.gmra.mrb[0].mxu0 %v865
      %v1243 = vpop.f32.mrb[0].mxu0
      %v1244 = vadd.f32 %v917, %v1243
      %v1245 = vpop.f32.mrb[0].mxu0
      %v1246 = vadd.f32 %v921, %v1245
      %v1247 = vpop.f32.mrb[0].mxu0
      %v1248 = vadd.f32 %v917, %v1247
      %v1249 = vpop.f32.mrb[0].mxu0
      %v1250 = vadd.f32 %v921, %v1249
      %1251 = vmatprep.mubr.bf16.mxu0 0
      %1252 = vmatmul.mubr.bf16.gmra.mrb[0].mxu0 %v866
      %v1253 = vpop.f32.mrb[0].mxu0
      %v1254 = vadd.f32 %v917, %v1253
      %v1255 = vpop.f32.mrb[0].mxu0
      %v1256 = vadd.f32 %v921, %v1255
      %v1257 = vpop.f32.mrb[0].mxu0
      %v1258 = vadd.f32 %v917, %v1257
      %v1259 = vpop.f32.mrb[0].mxu0
      %v1260 = vadd.f32 %v921, %v1259
      %1261 = vmatprep.mubr.bf16.mxu0 0
      %1262 = vmatmul.mubr.bf16.gmra.mrb[0].mxu0 %v867
      %v1263 = vpop.f32.mrb[0].mxu0
      %v1264 = vadd.f32 %v917, %v1263
      %v1265 = vpop.f32.mrb[0].mxu0
      %v1266 = vadd.f32 %v921, %v1265
      %v1267 = vpop.f32.mrb[0].mxu0
      %v1268 = vadd.f32 %v917, %v1267
      %v1269 = vpop.f32.mrb[0].mxu0
      %v1270 = vadd.f32 %v921, %v1269
      %1271 = vmatprep.mubr.bf16.mxu0 0
      %1272 = vmatmul.mubr.bf16.gmra.mrb[0].mxu0 %v868
      %v1273 = vpop.f32.mrb[0].mxu0
      %v1274 = vadd.f32 %v917, %v1273
      %v1275 = vpop.f32.mrb[0].mxu0
      %v1276 = vadd.f32 %v921, %v1275
      %v1277 = vpop.f32.mrb[0].mxu0
      %v1278 = vadd.f32 %v917, %v1277
      %v1279 = vpop.f32.mrb[0].mxu0
      %v1280 = vadd.f32 %v921, %v1279
      %1281 = vmatprep.mubr.bf16.mxu0 0
      %1282 = vmatmul.mubr.bf16.gmra.mrb[0].mxu0 %v869
      %v1283 = vpop.f32.mrb[0].mxu0
      %v1284 = vadd.f32 %v917, %v1283
      %v1285 = vpop.f32.mrb[0].mxu0
      %v1286 = vadd.f32 %v921, %v1285
      %v1287 = vpop.f32.mrb[0].mxu0
      %v1288 = vadd.f32 %v917, %v1287
      %v1289 = vpop.f32.mrb[0].mxu0
      %v1290 = vadd.f32 %v921, %v1289
      %1291 = vmatprep.mubr.bf16.mxu0 0
      %1292 = vmatmul.mubr.bf16.gmra.mrb[0].mxu0 %v870
      %v1293 = vpop.f32.mrb[0].mxu0
      %v1294 = vadd.f32 %v917, %v1293
      %v1295 = vpop.f32.mrb[0].mxu0
      %v1296 = vadd.f32 %v921, %v1295
      %v1297 = vpop.f32.mrb[0].mxu0
      %v1298 = vadd.f32 %v917, %v1297
      %v1299 = vpop.f32.mrb[0].mxu0
      %v1300 = vadd.f32 %v921, %v1299
      %1301 = vmatprep.mubr.bf16.mxu0 0
      %1302 = vmatmul.mubr.bf16.gmra.mrb[0].mxu0 %v871
      %v1303 = vpop.f32.mrb[0].mxu0
      %v1304 = vadd.f32 %v917, %v1303
      %v1305 = vpop.f32.mrb[0].mxu0
      %v1306 = vadd.f32 %v921, %v1305
      %v1307 = vpop.f32.mrb[0].mxu0
      %v1308 = vadd.f32 %v917, %v1307
      %v1309 = vpop.f32.mrb[0].mxu0
      %v1310 = vadd.f32 %v921, %v1309
      %1311 = vdwg.mxu0
      %v1312 = vld [vmem:[%s267] sm:$0xff]
      %v1313 = vld [vmem:[%s267 + $0x8] sm:$0xff]
      %v1314 = vld [vmem:[%s267 + $0x10] sm:$0xff]
      %v1315 = vld [vmem:[%s267 + $0x18] sm:$0xff]
      %v1316 = vld [vmem:[%s267 + $0x20] sm:$0xff]
      %v1317 = vld [vmem:[%s267 + $0x28] sm:$0xff]
      %v1318 = vld [vmem:[%s267 + $0x30] sm:$0xff]
      %v1319 = vld [vmem:[%s267 + $0x38] sm:$0xff]
      %v1320 = vld [vmem:[%s267 + $0x40] sm:$0xff]
      %v1321 = vld [vmem:[%s267 + $0x48] sm:$0xff]
      %v1322 = vld [vmem:[%s267 + $0x50] sm:$0xff]
      %v1323 = vld [vmem:[%s267 + $0x58] sm:$0xff]
      %v1324 = vld [vmem:[%s267 + $0x60] sm:$0xff]
      %v1325 = vld [vmem:[%s267 + $0x68] sm:$0xff]
      %v1326 = vld [vmem:[%s267 + $0x70] sm:$0xff]
      %v1327 = vld [vmem:[%s267 + $0x78] sm:$0xff]
      %vm1328 = vcmp.ne.s32.totalorder %v1312, 0
      %vm1329 = vcmp.ne.s32.totalorder %v1313, 0
      %vm1330 = vcmp.ne.s32.totalorder %v1314, 0
      %vm1331 = vcmp.ne.s32.totalorder %v1315, 0
      %vm1332 = vcmp.ne.s32.totalorder %v1316, 0
      %vm1333 = vcmp.ne.s32.totalorder %v1317, 0
      %vm1334 = vcmp.ne.s32.totalorder %v1318, 0
      %vm1335 = vcmp.ne.s32.totalorder %v1319, 0
      %vm1336 = vcmp.ne.s32.totalorder %v1320, 0
      %vm1337 = vcmp.ne.s32.totalorder %v1321, 0
      %vm1338 = vcmp.ne.s32.totalorder %v1322, 0
      %vm1339 = vcmp.ne.s32.totalorder %v1323, 0
      %vm1340 = vcmp.ne.s32.totalorder %v1324, 0
      %vm1341 = vcmp.ne.s32.totalorder %v1325, 0
      %vm1342 = vcmp.ne.s32.totalorder %v1326, 0
      %vm1343 = vcmp.ne.s32.totalorder %v1327, 0
      %v1344 = vsel %vm1328, 1, 0
      %v1345 = vsel %vm1329, 1, 0
      %v1346 = vsel %vm1330, 1, 0
      %v1347 = vsel %vm1331, 1, 0
      %v1348 = vsel %vm1332, 1, 0
      %v1349 = vsel %vm1333, 1, 0
      %v1350 = vsel %vm1334, 1, 0
      %v1351 = vsel %vm1335, 1, 0
      %v1352 = vsel %vm1336, 1, 0
      %v1353 = vsel %vm1337, 1, 0
      %v1354 = vsel %vm1338, 1, 0
      %v1355 = vsel %vm1339, 1, 0
      %v1356 = vsel %vm1340, 1, 0
      %v1357 = vsel %vm1341, 1, 0
      %v1358 = vsel %vm1342, 1, 0
      %v1359 = vsel %vm1343, 1, 0
      %v1360 = vcvt.s32.f32 %v1344
      %v1361 = vcvt.s32.f32 %v1345
      %v1362 = vcvt.s32.f32 %v1346
      %v1363 = vcvt.s32.f32 %v1347
      %v1364 = vcvt.s32.f32 %v1348
      %v1365 = vcvt.s32.f32 %v1349
      %v1366 = vcvt.s32.f32 %v1350
      %v1367 = vcvt.s32.f32 %v1351
      %v1368 = vcvt.s32.f32 %v1352
      %v1369 = vcvt.s32.f32 %v1353
      %v1370 = vcvt.s32.f32 %v1354
      %v1371 = vcvt.s32.f32 %v1355
      %v1372 = vcvt.s32.f32 %v1356
      %v1373 = vcvt.s32.f32 %v1357
      %v1374 = vcvt.s32.f32 %v1358
      %v1375 = vcvt.s32.f32 %v1359
      %v1376 = vmax.f32 %v1121, %v1123
      %v1377 = vmax.f32 %v1376, %v1234
      %v1378 = vmax.f32 %v1377, %v1236
      %1379 = vmax.xlane.f32.xlu0 %v1378
      %v1380 = vpop.xlane.xlu0 %1379
      %v1381 = vmax.f32 %v1125, %v1127
      %v1382 = vmax.f32 %v1381, %v1238
      %v1383 = vmax.f32 %v1382, %v1240
      %1384 = vmax.xlane.f32.xlu0 %v1383
      %v1385 = vpop.xlane.xlu0 %1384
      %v1386 = vmax.f32 %v1131, %v1133
      %v1387 = vmax.f32 %v1386, %v1244
      %v1388 = vmax.f32 %v1387, %v1246
      %1389 = vmax.xlane.f32.xlu0 %v1388
      %v1390 = vpop.xlane.xlu0 %1389
      %v1391 = vmax.f32 %v1135, %v1137
      %v1392 = vmax.f32 %v1391, %v1248
      %v1393 = vmax.f32 %v1392, %v1250
      %1394 = vmax.xlane.f32.xlu0 %v1393
      %v1395 = vpop.xlane.xlu0 %1394
      %v1396 = vmax.f32 %v1141, %v1143
      %v1397 = vmax.f32 %v1396, %v1254
      %v1398 = vmax.f32 %v1397, %v1256
      %1399 = vmax.xlane.f32.xlu0 %v1398
      %v1400 = vpop.xlane.xlu0 %1399
      %v1401 = vmax.f32 %v1145, %v1147
      %v1402 = vmax.f32 %v1401, %v1258
      %v1403 = vmax.f32 %v1402, %v1260
      %1404 = vmax.xlane.f32.xlu0 %v1403
      %v1405 = vpop.xlane.xlu0 %1404
      %v1406 = vmax.f32 %v1151, %v1153
      %v1407 = vmax.f32 %v1406, %v1264
      %v1408 = vmax.f32 %v1407, %v1266
      %1409 = vmax.xlane.f32.xlu0 %v1408
      %v1410 = vpop.xlane.xlu0 %1409
      %v1411 = vmax.f32 %v1155, %v1157
      %v1412 = vmax.f32 %v1411, %v1268
      %v1413 = vmax.f32 %v1412, %v1270
      %1414 = vmax.xlane.f32.xlu0 %v1413
      %v1415 = vpop.xlane.xlu0 %1414
      %v1416 = vmax.f32 %v1161, %v1163
      %v1417 = vmax.f32 %v1416, %v1274
      %v1418 = vmax.f32 %v1417, %v1276
      %1419 = vmax.xlane.f32.xlu0 %v1418
      %v1420 = vpop.xlane.xlu0 %1419
      %v1421 = vmax.f32 %v1165, %v1167
      %v1422 = vmax.f32 %v1421, %v1278
      %v1423 = vmax.f32 %v1422, %v1280
      %1424 = vmax.xlane.f32.xlu0 %v1423
      %v1425 = vpop.xlane.xlu0 %1424
      %v1426 = vmax.f32 %v1171, %v1173
      %v1427 = vmax.f32 %v1426, %v1284
      %v1428 = vmax.f32 %v1427, %v1286
      %1429 = vmax.xlane.f32.xlu0 %v1428
      %v1430 = vpop.xlane.xlu0 %1429
      %v1431 = vmax.f32 %v1175, %v1177
      %v1432 = vmax.f32 %v1431, %v1288
      %v1433 = vmax.f32 %v1432, %v1290
      %1434 = vmax.xlane.f32.xlu0 %v1433
      %v1435 = vpop.xlane.xlu0 %1434
      %v1436 = vmax.f32 %v1181, %v1183
      %v1437 = vmax.f32 %v1436, %v1294
      %v1438 = vmax.f32 %v1437, %v1296
      %1439 = vmax.xlane.f32.xlu0 %v1438
      %v1440 = vpop.xlane.xlu0 %1439
      %v1441 = vmax.f32 %v1185, %v1187
      %v1442 = vmax.f32 %v1441, %v1298
      %v1443 = vmax.f32 %v1442, %v1300
      %1444 = vmax.xlane.f32.xlu0 %v1443
      %v1445 = vpop.xlane.xlu0 %1444
      %v1446 = vmax.f32 %v1191, %v1193
      %v1447 = vmax.f32 %v1446, %v1304
      %v1448 = vmax.f32 %v1447, %v1306
      %1449 = vmax.xlane.f32.xlu0 %v1448
      %v1450 = vpop.xlane.xlu0 %1449
      %v1451 = vmax.f32 %v1195, %v1197
      %v1452 = vmax.f32 %v1451, %v1308
      %v1453 = vmax.f32 %v1452, %v1310
      %1454 = vmax.xlane.f32.xlu0 %v1453
      %v1455 = vpop.xlane.xlu0 %1454
      %v1456 = vsub.f32 %v1121, %v1380
      %v1457 = vsub.f32 %v1123, %v1380
      %v1458 = vsub.f32 %v1234, %v1380
      %v1459 = vsub.f32 %v1236, %v1380
      %v1460 = vsub.f32 %v1125, %v1385
      %v1461 = vsub.f32 %v1127, %v1385
      %v1462 = vsub.f32 %v1238, %v1385
      %v1463 = vsub.f32 %v1240, %v1385
      %v1464 = vsub.f32 %v1131, %v1390
      %v1465 = vsub.f32 %v1133, %v1390
      %v1466 = vsub.f32 %v1244, %v1390
      %v1467 = vsub.f32 %v1246, %v1390
      %v1468 = vsub.f32 %v1135, %v1395
      %v1469 = vsub.f32 %v1137, %v1395
      %v1470 = vsub.f32 %v1248, %v1395
      %v1471 = vsub.f32 %v1250, %v1395
      %v1472 = vsub.f32 %v1141, %v1400
      %v1473 = vsub.f32 %v1143, %v1400
      %v1474 = vsub.f32 %v1254, %v1400
      %v1475 = vsub.f32 %v1256, %v1400
      %v1476 = vsub.f32 %v1145, %v1405
      %v1477 = vsub.f32 %v1147, %v1405
      %v1478 = vsub.f32 %v1258, %v1405
      %v1479 = vsub.f32 %v1260, %v1405
      %v1480 = vsub.f32 %v1151, %v1410
      %v1481 = vsub.f32 %v1153, %v1410
      %v1482 = vsub.f32 %v1264, %v1410
      %v1483 = vsub.f32 %v1266, %v1410
      %v1484 = vsub.f32 %v1155, %v1415
      %v1485 = vsub.f32 %v1157, %v1415
      %v1486 = vsub.f32 %v1268, %v1415
      %v1487 = vsub.f32 %v1270, %v1415
      %v1488 = vsub.f32 %v1161, %v1420
      %v1489 = vsub.f32 %v1163, %v1420
      %v1490 = vsub.f32 %v1274, %v1420
      %v1491 = vsub.f32 %v1276, %v1420
      %v1492 = vsub.f32 %v1165, %v1425
      %v1493 = vsub.f32 %v1167, %v1425
      %v1494 = vsub.f32 %v1278, %v1425
      %v1495 = vsub.f32 %v1280, %v1425
      %v1496 = vsub.f32 %v1171, %v1430
      %v1497 = vsub.f32 %v1173, %v1430
      %v1498 = vsub.f32 %v1284, %v1430
      %v1499 = vsub.f32 %v1286, %v1430
      %v1500 = vsub.f32 %v1175, %v1435
      %v1501 = vsub.f32 %v1177, %v1435
      %v1502 = vsub.f32 %v1288, %v1435
      %v1503 = vsub.f32 %v1290, %v1435
      %v1504 = vsub.f32 %v1181, %v1440
      %v1505 = vsub.f32 %v1183, %v1440
      %v1506 = vsub.f32 %v1294, %v1440
      %v1507 = vsub.f32 %v1296, %v1440
      %v1508 = vsub.f32 %v1185, %v1445
      %v1509 = vsub.f32 %v1187, %v1445
      %v1510 = vsub.f32 %v1298, %v1445
      %v1511 = vsub.f32 %v1300, %v1445
      %v1512 = vsub.f32 %v1191, %v1450
      %v1513 = vsub.f32 %v1193, %v1450
      %v1514 = vsub.f32 %v1304, %v1450
      %v1515 = vsub.f32 %v1306, %v1450
      %v1516 = vsub.f32 %v1195, %v1455
      %v1517 = vsub.f32 %v1197, %v1455
      %v1518 = vsub.f32 %v1308, %v1455
      %v1519 = vsub.f32 %v1310, %v1455
      %v1520 = vmul.f32 %v1456, 1.442695
      %v1521 = vpow.pop %v1520
      %v1522 = vmul.f32 %v1457, 1.442695
      %v1523 = vpow.pop %v1522
      %v1524 = vmul.f32 %v1458, 1.442695
      %v1525 = vpow.pop %v1524
      %v1526 = vmul.f32 %v1459, 1.442695
      %v1527 = vpow.pop %v1526
      %v1528 = vmul.f32 %v1460, 1.442695
      %v1529 = vpow.pop %v1528
      %v1530 = vmul.f32 %v1461, 1.442695
      %v1531 = vpow.pop %v1530
      %v1532 = vmul.f32 %v1462, 1.442695
      %v1533 = vpow.pop %v1532
      %v1534 = vmul.f32 %v1463, 1.442695
      %v1535 = vpow.pop %v1534
      %v1536 = vmul.f32 %v1464, 1.442695
      %v1537 = vpow.pop %v1536
      %v1538 = vmul.f32 %v1465, 1.442695
      %v1539 = vpow.pop %v1538
      %v1540 = vmul.f32 %v1466, 1.442695
      %v1541 = vpow.pop %v1540
      %v1542 = vmul.f32 %v1467, 1.442695
      %v1543 = vpow.pop %v1542
      %v1544 = vmul.f32 %v1468, 1.442695
      %v1545 = vpow.pop %v1544
      %v1546 = vmul.f32 %v1469, 1.442695
      %v1547 = vpow.pop %v1546
      %v1548 = vmul.f32 %v1470, 1.442695
      %v1549 = vpow.pop %v1548
      %v1550 = vmul.f32 %v1471, 1.442695
      %v1551 = vpow.pop %v1550
      %v1552 = vmul.f32 %v1472, 1.442695
      %v1553 = vpow.pop %v1552
      %v1554 = vmul.f32 %v1473, 1.442695
      %v1555 = vpow.pop %v1554
      %v1556 = vmul.f32 %v1474, 1.442695
      %v1557 = vpow.pop %v1556
      %v1558 = vmul.f32 %v1475, 1.442695
      %v1559 = vpow.pop %v1558
      %v1560 = vmul.f32 %v1476, 1.442695
      %v1561 = vpow.pop %v1560
      %v1562 = vmul.f32 %v1477, 1.442695
      %v1563 = vpow.pop %v1562
      %v1564 = vmul.f32 %v1478, 1.442695
      %v1565 = vpow.pop %v1564
      %v1566 = vmul.f32 %v1479, 1.442695
      %v1567 = vpow.pop %v1566
      %v1568 = vmul.f32 %v1480, 1.442695
      %v1569 = vpow.pop %v1568
      %v1570 = vmul.f32 %v1481, 1.442695
      %v1571 = vpow.pop %v1570
      %v1572 = vmul.f32 %v1482, 1.442695
      %v1573 = vpow.pop %v1572
      %v1574 = vmul.f32 %v1483, 1.442695
      %v1575 = vpow.pop %v1574
      %v1576 = vmul.f32 %v1484, 1.442695
      %v1577 = vpow.pop %v1576
      %v1578 = vmul.f32 %v1485, 1.442695
      %v1579 = vpow.pop %v1578
      %v1580 = vmul.f32 %v1486, 1.442695
      %v1581 = vpow.pop %v1580
      %v1582 = vmul.f32 %v1487, 1.442695
      %v1583 = vpow.pop %v1582
      %v1584 = vmul.f32 %v1488, 1.442695
      %v1585 = vpow.pop %v1584
      %v1586 = vmul.f32 %v1489, 1.442695
      %v1587 = vpow.pop %v1586
      %v1588 = vmul.f32 %v1490, 1.442695
      %v1589 = vpow.pop %v1588
      %v1590 = vmul.f32 %v1491, 1.442695
      %v1591 = vpow.pop %v1590
      %v1592 = vmul.f32 %v1492, 1.442695
      %v1593 = vpow.pop %v1592
      %v1594 = vmul.f32 %v1493, 1.442695
      %v1595 = vpow.pop %v1594
      %v1596 = vmul.f32 %v1494, 1.442695
      %v1597 = vpow.pop %v1596
      %v1598 = vmul.f32 %v1495, 1.442695
      %v1599 = vpow.pop %v1598
      %v1600 = vmul.f32 %v1496, 1.442695
      %v1601 = vpow.pop %v1600
      %v1602 = vmul.f32 %v1497, 1.442695
      %v1603 = vpow.pop %v1602
      %v1604 = vmul.f32 %v1498, 1.442695
      %v1605 = vpow.pop %v1604
      %v1606 = vmul.f32 %v1499, 1.442695
      %v1607 = vpow.pop %v1606
      %v1608 = vmul.f32 %v1500, 1.442695
      %v1609 = vpow.pop %v1608
      %v1610 = vmul.f32 %v1501, 1.442695
      %v1611 = vpow.pop %v1610
      %v1612 = vmul.f32 %v1502, 1.442695
      %v1613 = vpow.pop %v1612
      %v1614 = vmul.f32 %v1503, 1.442695
      %v1615 = vpow.pop %v1614
      %v1616 = vmul.f32 %v1504, 1.442695
      %v1617 = vpow.pop %v1616
      %v1618 = vmul.f32 %v1505, 1.442695
      %v1619 = vpow.pop %v1618
      %v1620 = vmul.f32 %v1506, 1.442695
      %v1621 = vpow.pop %v1620
      %v1622 = vmul.f32 %v1507, 1.442695
      %v1623 = vpow.pop %v1622
      %v1624 = vmul.f32 %v1508, 1.442695
      %v1625 = vpow.pop %v1624
      %v1626 = vmul.f32 %v1509, 1.442695
      %v1627 = vpow.pop %v1626
      %v1628 = vmul.f32 %v1510, 1.442695
      %v1629 = vpow.pop %v1628
      %v1630 = vmul.f32 %v1511, 1.442695
      %v1631 = vpow.pop %v1630
      %v1632 = vmul.f32 %v1512, 1.442695
      %v1633 = vpow.pop %v1632
      %v1634 = vmul.f32 %v1513, 1.442695
      %v1635 = vpow.pop %v1634
      %v1636 = vmul.f32 %v1514, 1.442695
      %v1637 = vpow.pop %v1636
      %v1638 = vmul.f32 %v1515, 1.442695
      %v1639 = vpow.pop %v1638
      %v1640 = vmul.f32 %v1516, 1.442695
      %v1641 = vpow.pop %v1640
      %v1642 = vmul.f32 %v1517, 1.442695
      %v1643 = vpow.pop %v1642
      %v1644 = vmul.f32 %v1518, 1.442695
      %v1645 = vpow.pop %v1644
      %v1646 = vmul.f32 %v1519, 1.442695
      %v1647 = vpow.pop %v1646
      %v1648 = vadd.f32 %v1521, %v1523
      %v1649 = vadd.f32 %v1648, %v1525
      %v1650 = vadd.f32 %v1649, %v1527
      %1651 = vadd.xlane.f32.xlu0 %v1650
      %v1652 = vpop.xlane.xlu0 %1651
      %v1653 = vadd.f32 %v1529, %v1531
      %v1654 = vadd.f32 %v1653, %v1533
      %v1655 = vadd.f32 %v1654, %v1535
      %1656 = vadd.xlane.f32.xlu0 %v1655
      %v1657 = vpop.xlane.xlu0 %1656
      %v1658 = vadd.f32 %v1537, %v1539
      %v1659 = vadd.f32 %v1658, %v1541
      %v1660 = vadd.f32 %v1659, %v1543
      %1661 = vadd.xlane.f32.xlu0 %v1660
      %v1662 = vpop.xlane.xlu0 %1661
      %v1663 = vadd.f32 %v1545, %v1547
      %v1664 = vadd.f32 %v1663, %v1549
      %v1665 = vadd.f32 %v1664, %v1551
      %1666 = vadd.xlane.f32.xlu0 %v1665
      %v1667 = vpop.xlane.xlu0 %1666
      %v1668 = vadd.f32 %v1553, %v1555
      %v1669 = vadd.f32 %v1668, %v1557
      %v1670 = vadd.f32 %v1669, %v1559
      %1671 = vadd.xlane.f32.xlu0 %v1670
      %v1672 = vpop.xlane.xlu0 %1671
      %v1673 = vadd.f32 %v1561, %v1563
      %v1674 = vadd.f32 %v1673, %v1565
      %v1675 = vadd.f32 %v1674, %v1567
      %1676 = vadd.xlane.f32.xlu0 %v1675
      %v1677 = vpop.xlane.xlu0 %1676
      %v1678 = vadd.f32 %v1569, %v1571
      %v1679 = vadd.f32 %v1678, %v1573
      %v1680 = vadd.f32 %v1679, %v1575
      %1681 = vadd.xlane.f32.xlu0 %v1680
      %v1682 = vpop.xlane.xlu0 %1681
      %v1683 = vadd.f32 %v1577, %v1579
      %v1684 = vadd.f32 %v1683, %v1581
      %v1685 = vadd.f32 %v1684, %v1583
      %1686 = vadd.xlane.f32.xlu0 %v1685
      %v1687 = vpop.xlane.xlu0 %1686
      %v1688 = vadd.f32 %v1585, %v1587
      %v1689 = vadd.f32 %v1688, %v1589
      %v1690 = vadd.f32 %v1689, %v1591
      %1691 = vadd.xlane.f32.xlu0 %v1690
      %v1692 = vpop.xlane.xlu0 %1691
      %v1693 = vadd.f32 %v1593, %v1595
      %v1694 = vadd.f32 %v1693, %v1597
      %v1695 = vadd.f32 %v1694, %v1599
      %1696 = vadd.xlane.f32.xlu0 %v1695
      %v1697 = vpop.xlane.xlu0 %1696
      %v1698 = vadd.f32 %v1601, %v1603
      %v1699 = vadd.f32 %v1698, %v1605
      %v1700 = vadd.f32 %v1699, %v1607
      %1701 = vadd.xlane.f32.xlu0 %v1700
      %v1702 = vpop.xlane.xlu0 %1701
      %v1703 = vadd.f32 %v1609, %v1611
      %v1704 = vadd.f32 %v1703, %v1613
      %v1705 = vadd.f32 %v1704, %v1615
      %1706 = vadd.xlane.f32.xlu0 %v1705
      %v1707 = vpop.xlane.xlu0 %1706
      %v1708 = vadd.f32 %v1617, %v1619
      %v1709 = vadd.f32 %v1708, %v1621
      %v1710 = vadd.f32 %v1709, %v1623
      %1711 = vadd.xlane.f32.xlu0 %v1710
      %v1712 = vpop.xlane.xlu0 %1711
      %v1713 = vadd.f32 %v1625, %v1627
      %v1714 = vadd.f32 %v1713, %v1629
      %v1715 = vadd.f32 %v1714, %v1631
      %1716 = vadd.xlane.f32.xlu0 %v1715
      %v1717 = vpop.xlane.xlu0 %1716
      %v1718 = vadd.f32 %v1633, %v1635
      %v1719 = vadd.f32 %v1718, %v1637
      %v1720 = vadd.f32 %v1719, %v1639
      %1721 = vadd.xlane.f32.xlu0 %v1720
      %v1722 = vpop.xlane.xlu0 %1721
      %v1723 = vadd.f32 %v1641, %v1643
      %v1724 = vadd.f32 %v1723, %v1645
      %v1725 = vadd.f32 %v1724, %v1647
      %1726 = vadd.xlane.f32.xlu0 %v1725
      %v1727 = vpop.xlane.xlu0 %1726
      %v1728 = vlaneseq
      %v1729 = vand.u32 %v1728, 127
      %v1730 = vadd.s32 %v1729, 128
      %v1731 = vadd.s32 %v1729, 256
      %v1732 = vadd.s32 %v1729, 384
      %1733 = vset.pattern.permute.xlu0 0
      %1734 = vperm.xlu0 %1733, %v1312
      %v1735 = vpop.permute.xlu0 %1734
      %1736 = vset.pattern.permute.xlu0 0
      %1737 = vperm.xlu0 %1736, %v1313
      %v1738 = vpop.permute.xlu0 %1737
      %1739 = vset.pattern.permute.xlu0 0
      %1740 = vperm.xlu0 %1739, %v1314
      %v1741 = vpop.permute.xlu0 %1740
      %1742 = vset.pattern.permute.xlu0 0
      %1743 = vperm.xlu0 %1742, %v1315
      %v1744 = vpop.permute.xlu0 %1743
      %1745 = vset.pattern.permute.xlu0 0
      %1746 = vperm.xlu0 %1745, %v1316
      %v1747 = vpop.permute.xlu0 %1746
      %1748 = vset.pattern.permute.xlu0 0
      %1749 = vperm.xlu0 %1748, %v1317
      %v1750 = vpop.permute.xlu0 %1749
      %1751 = vset.pattern.permute.xlu0 0
      %1752 = vperm.xlu0 %1751, %v1318
      %v1753 = vpop.permute.xlu0 %1752
      %1754 = vset.pattern.permute.xlu0 0
      %1755 = vperm.xlu0 %1754, %v1319
      %v1756 = vpop.permute.xlu0 %1755
      %1757 = vset.pattern.permute.xlu0 0
      %1758 = vperm.xlu0 %1757, %v1320
      %v1759 = vpop.permute.xlu0 %1758
      %1760 = vset.pattern.permute.xlu0 0
      %1761 = vperm.xlu0 %1760, %v1321
      %v1762 = vpop.permute.xlu0 %1761
      %1763 = vset.pattern.permute.xlu0 0
      %1764 = vperm.xlu0 %1763, %v1322
      %v1765 = vpop.permute.xlu0 %1764
      %1766 = vset.pattern.permute.xlu0 0
      %1767 = vperm.xlu0 %1766, %v1323
      %v1768 = vpop.permute.xlu0 %1767
      %1769 = vset.pattern.permute.xlu0 0
      %1770 = vperm.xlu0 %1769, %v1324
      %v1771 = vpop.permute.xlu0 %1770
      %1772 = vset.pattern.permute.xlu0 0
      %1773 = vperm.xlu0 %1772, %v1325
      %v1774 = vpop.permute.xlu0 %1773
      %1775 = vset.pattern.permute.xlu0 0
      %1776 = vperm.xlu0 %1775, %v1326
      %v1777 = vpop.permute.xlu0 %1776
      %1778 = vset.pattern.permute.xlu0 0
      %1779 = vperm.xlu0 %1778, %v1327
      %v1780 = vpop.permute.xlu0 %1779
      %vm1781 = vcmp.eq.s32.totalorder %v1729, %v1735
      %vm1782 = vcmp.eq.s32.totalorder %v1730, %v1735
      %vm1783 = vcmp.eq.s32.totalorder %v1731, %v1735
      %vm1784 = vcmp.eq.s32.totalorder %v1732, %v1735
      %vm1785 = vcmp.eq.s32.totalorder %v1729, %v1738
      %vm1786 = vcmp.eq.s32.totalorder %v1730, %v1738
      %vm1787 = vcmp.eq.s32.totalorder %v1731, %v1738
      %vm1788 = vcmp.eq.s32.totalorder %v1732, %v1738
      %vm1789 = vcmp.eq.s32.totalorder %v1729, %v1741
      %vm1790 = vcmp.eq.s32.totalorder %v1730, %v1741
      %vm1791 = vcmp.eq.s32.totalorder %v1731, %v1741
      %vm1792 = vcmp.eq.s32.totalorder %v1732, %v1741
      %vm1793 = vcmp.eq.s32.totalorder %v1729, %v1744
      %vm1794 = vcmp.eq.s32.totalorder %v1730, %v1744
      %vm1795 = vcmp.eq.s32.totalorder %v1731, %v1744
      %vm1796 = vcmp.eq.s32.totalorder %v1732, %v1744
      %vm1797 = vcmp.eq.s32.totalorder %v1729, %v1747
      %vm1798 = vcmp.eq.s32.totalorder %v1730, %v1747
      %vm1799 = vcmp.eq.s32.totalorder %v1731, %v1747
      %vm1800 = vcmp.eq.s32.totalorder %v1732, %v1747
      %vm1801 = vcmp.eq.s32.totalorder %v1729, %v1750
      %vm1802 = vcmp.eq.s32.totalorder %v1730, %v1750
      %vm1803 = vcmp.eq.s32.totalorder %v1731, %v1750
      %vm1804 = vcmp.eq.s32.totalorder %v1732, %v1750
      %vm1805 = vcmp.eq.s32.totalorder %v1729, %v1753
      %vm1806 = vcmp.eq.s32.totalorder %v1730, %v1753
      %vm1807 = vcmp.eq.s32.totalorder %v1731, %v1753
      %vm1808 = vcmp.eq.s32.totalorder %v1732, %v1753
      %vm1809 = vcmp.eq.s32.totalorder %v1729, %v1756
      %vm1810 = vcmp.eq.s32.totalorder %v1730, %v1756
      %vm1811 = vcmp.eq.s32.totalorder %v1731, %v1756
      %vm1812 = vcmp.eq.s32.totalorder %v1732, %v1756
      %vm1813 = vcmp.eq.s32.totalorder %v1729, %v1759
      %vm1814 = vcmp.eq.s32.totalorder %v1730, %v1759
      %vm1815 = vcmp.eq.s32.totalorder %v1731, %v1759
      %vm1816 = vcmp.eq.s32.totalorder %v1732, %v1759
      %vm1817 = vcmp.eq.s32.totalorder %v1729, %v1762
      %vm1818 = vcmp.eq.s32.totalorder %v1730, %v1762
      %vm1819 = vcmp.eq.s32.totalorder %v1731, %v1762
      %vm1820 = vcmp.eq.s32.totalorder %v1732, %v1762
      %vm1821 = vcmp.eq.s32.totalorder %v1729, %v1765
      %vm1822 = vcmp.eq.s32.totalorder %v1730, %v1765
      %vm1823 = vcmp.eq.s32.totalorder %v1731, %v1765
      %vm1824 = vcmp.eq.s32.totalorder %v1732, %v1765
      %vm1825 = vcmp.eq.s32.totalorder %v1729, %v1768
      %vm1826 = vcmp.eq.s32.totalorder %v1730, %v1768
      %vm1827 = vcmp.eq.s32.totalorder %v1731, %v1768
      %vm1828 = vcmp.eq.s32.totalorder %v1732, %v1768
      %vm1829 = vcmp.eq.s32.totalorder %v1729, %v1771
      %vm1830 = vcmp.eq.s32.totalorder %v1730, %v1771
      %vm1831 = vcmp.eq.s32.totalorder %v1731, %v1771
      %vm1832 = vcmp.eq.s32.totalorder %v1732, %v1771
      %vm1833 = vcmp.eq.s32.totalorder %v1729, %v1774
      %vm1834 = vcmp.eq.s32.totalorder %v1730, %v1774
      %vm1835 = vcmp.eq.s32.totalorder %v1731, %v1774
      %vm1836 = vcmp.eq.s32.totalorder %v1732, %v1774
      %vm1837 = vcmp.eq.s32.totalorder %v1729, %v1777
      %vm1838 = vcmp.eq.s32.totalorder %v1730, %v1777
      %vm1839 = vcmp.eq.s32.totalorder %v1731, %v1777
      %vm1840 = vcmp.eq.s32.totalorder %v1732, %v1777
      %vm1841 = vcmp.eq.s32.totalorder %v1729, %v1780
      %vm1842 = vcmp.eq.s32.totalorder %v1730, %v1780
      %vm1843 = vcmp.eq.s32.totalorder %v1731, %v1780
      %vm1844 = vcmp.eq.s32.totalorder %v1732, %v1780
      %v1845 = vsel %vm1781, %v1456, 0.0
      %v1846 = vsel %vm1782, %v1457, 0.0
      %v1847 = vsel %vm1783, %v1458, 0.0
      %v1848 = vsel %vm1784, %v1459, 0.0
      %v1849 = vsel %vm1785, %v1460, 0.0
      %v1850 = vsel %vm1786, %v1461, 0.0
      %v1851 = vsel %vm1787, %v1462, 0.0
      %v1852 = vsel %vm1788, %v1463, 0.0
      %v1853 = vsel %vm1789, %v1464, 0.0
      %v1854 = vsel %vm1790, %v1465, 0.0
      %v1855 = vsel %vm1791, %v1466, 0.0
      %v1856 = vsel %vm1792, %v1467, 0.0
      %v1857 = vsel %vm1793, %v1468, 0.0
      %v1858 = vsel %vm1794, %v1469, 0.0
      %v1859 = vsel %vm1795, %v1470, 0.0
      %v1860 = vsel %vm1796, %v1471, 0.0
      %v1861 = vsel %vm1797, %v1472, 0.0
      %v1862 = vsel %vm1798, %v1473, 0.0
      %v1863 = vsel %vm1799, %v1474, 0.0
      %v1864 = vsel %vm1800, %v1475, 0.0
      %v1865 = vsel %vm1801, %v1476, 0.0
      %v1866 = vsel %vm1802, %v1477, 0.0
      %v1867 = vsel %vm1803, %v1478, 0.0
      %v1868 = vsel %vm1804, %v1479, 0.0
      %v1869 = vsel %vm1805, %v1480, 0.0
      %v1870 = vsel %vm1806, %v1481, 0.0
      %v1871 = vsel %vm1807, %v1482, 0.0
      %v1872 = vsel %vm1808, %v1483, 0.0
      %v1873 = vsel %vm1809, %v1484, 0.0
      %v1874 = vsel %vm1810, %v1485, 0.0
      %v1875 = vsel %vm1811, %v1486, 0.0
      %v1876 = vsel %vm1812, %v1487, 0.0
      %v1877 = vsel %vm1813, %v1488, 0.0
      %v1878 = vsel %vm1814, %v1489, 0.0
      %v1879 = vsel %vm1815, %v1490, 0.0
      %v1880 = vsel %vm1816, %v1491, 0.0
      %v1881 = vsel %vm1817, %v1492, 0.0
      %v1882 = vsel %vm1818, %v1493, 0.0
      %v1883 = vsel %vm1819, %v1494, 0.0
      %v1884 = vsel %vm1820, %v1495, 0.0
      %v1885 = vsel %vm1821, %v1496, 0.0
      %v1886 = vsel %vm1822, %v1497, 0.0
      %v1887 = vsel %vm1823, %v1498, 0.0
      %v1888 = vsel %vm1824, %v1499, 0.0
      %v1889 = vsel %vm1825, %v1500, 0.0
      %v1890 = vsel %vm1826, %v1501, 0.0
      %v1891 = vsel %vm1827, %v1502, 0.0
      %v1892 = vsel %vm1828, %v1503, 0.0
      %v1893 = vsel %vm1829, %v1504, 0.0
      %v1894 = vsel %vm1830, %v1505, 0.0
      %v1895 = vsel %vm1831, %v1506, 0.0
      %v1896 = vsel %vm1832, %v1507, 0.0
      %v1897 = vsel %vm1833, %v1508, 0.0
      %v1898 = vsel %vm1834, %v1509, 0.0
      %v1899 = vsel %vm1835, %v1510, 0.0
      %v1900 = vsel %vm1836, %v1511, 0.0
      %v1901 = vsel %vm1837, %v1512, 0.0
      %v1902 = vsel %vm1838, %v1513, 0.0
      %v1903 = vsel %vm1839, %v1514, 0.0
      %v1904 = vsel %vm1840, %v1515, 0.0
      %v1905 = vsel %vm1841, %v1516, 0.0
      %v1906 = vsel %vm1842, %v1517, 0.0
      %v1907 = vsel %vm1843, %v1518, 0.0
      %v1908 = vsel %vm1844, %v1519, 0.0
      %v1909 = vadd.f32 %v1845, %v1846
      %v1910 = vadd.f32 %v1909, %v1847
      %v1911 = vadd.f32 %v1910, %v1848
      %1912 = vadd.xlane.f32.xlu0 %v1911
      %v1913 = vpop.xlane.xlu0 %1912
      %v1914 = vadd.f32 %v1849, %v1850
      %v1915 = vadd.f32 %v1914, %v1851
      %v1916 = vadd.f32 %v1915, %v1852
      %1917 = vadd.xlane.f32.xlu0 %v1916
      %v1918 = vpop.xlane.xlu0 %1917
      %v1919 = vadd.f32 %v1853, %v1854
      %v1920 = vadd.f32 %v1919, %v1855
      %v1921 = vadd.f32 %v1920, %v1856
      %1922 = vadd.xlane.f32.xlu0 %v1921
      %v1923 = vpop.xlane.xlu0 %1922
      %v1924 = vadd.f32 %v1857, %v1858
      %v1925 = vadd.f32 %v1924, %v1859
      %v1926 = vadd.f32 %v1925, %v1860
      %1927 = vadd.xlane.f32.xlu0 %v1926
      %v1928 = vpop.xlane.xlu0 %1927
      %v1929 = vadd.f32 %v1861, %v1862
      %v1930 = vadd.f32 %v1929, %v1863
      %v1931 = vadd.f32 %v1930, %v1864
      %1932 = vadd.xlane.f32.xlu0 %v1931
      %v1933 = vpop.xlane.xlu0 %1932
      %v1934 = vadd.f32 %v1865, %v1866
      %v1935 = vadd.f32 %v1934, %v1867
      %v1936 = vadd.f32 %v1935, %v1868
      %1937 = vadd.xlane.f32.xlu0 %v1936
      %v1938 = vpop.xlane.xlu0 %1937
      %v1939 = vadd.f32 %v1869, %v1870
      %v1940 = vadd.f32 %v1939, %v1871
      %v1941 = vadd.f32 %v1940, %v1872
      %1942 = vadd.xlane.f32.xlu0 %v1941
      %v1943 = vpop.xlane.xlu0 %1942
      %v1944 = vadd.f32 %v1873, %v1874
      %v1945 = vadd.f32 %v1944, %v1875
      %v1946 = vadd.f32 %v1945, %v1876
      %1947 = vadd.xlane.f32.xlu0 %v1946
      %v1948 = vpop.xlane.xlu0 %1947
      %v1949 = vadd.f32 %v1877, %v1878
      %v1950 = vadd.f32 %v1949, %v1879
      %v1951 = vadd.f32 %v1950, %v1880
      %1952 = vadd.xlane.f32.xlu0 %v1951
      %v1953 = vpop.xlane.xlu0 %1952
      %v1954 = vadd.f32 %v1881, %v1882
      %v1955 = vadd.f32 %v1954, %v1883
      %v1956 = vadd.f32 %v1955, %v1884
      %1957 = vadd.xlane.f32.xlu0 %v1956
      %v1958 = vpop.xlane.xlu0 %1957
      %v1959 = vadd.f32 %v1885, %v1886
      %v1960 = vadd.f32 %v1959, %v1887
      %v1961 = vadd.f32 %v1960, %v1888
      %1962 = vadd.xlane.f32.xlu0 %v1961
      %v1963 = vpop.xlane.xlu0 %1962
      %v1964 = vadd.f32 %v1889, %v1890
      %v1965 = vadd.f32 %v1964, %v1891
      %v1966 = vadd.f32 %v1965, %v1892
      %1967 = vadd.xlane.f32.xlu0 %v1966
      %v1968 = vpop.xlane.xlu0 %1967
      %v1969 = vadd.f32 %v1893, %v1894
      %v1970 = vadd.f32 %v1969, %v1895
      %v1971 = vadd.f32 %v1970, %v1896
      %1972 = vadd.xlane.f32.xlu0 %v1971
      %v1973 = vpop.xlane.xlu0 %1972
      %v1974 = vadd.f32 %v1897, %v1898
      %v1975 = vadd.f32 %v1974, %v1899
      %v1976 = vadd.f32 %v1975, %v1900
      %1977 = vadd.xlane.f32.xlu0 %v1976
      %v1978 = vpop.xlane.xlu0 %1977
      %v1979 = vadd.f32 %v1901, %v1902
      %v1980 = vadd.f32 %v1979, %v1903
      %v1981 = vadd.f32 %v1980, %v1904
      %1982 = vadd.xlane.f32.xlu0 %v1981
      %v1983 = vpop.xlane.xlu0 %1982
      %v1984 = vadd.f32 %v1905, %v1906
      %v1985 = vadd.f32 %v1984, %v1907
      %v1986 = vadd.f32 %v1985, %v1908
      %1987 = vadd.xlane.f32.xlu0 %v1986
      %v1988 = vpop.xlane.xlu0 %1987
      %v1989 = vlog2.pop %v1652
      %v1990 = vmul.f32 %v1989, 0.6931472
      %v1991 = vlog2.pop %v1657
      %v1992 = vmul.f32 %v1991, 0.6931472
      %v1993 = vlog2.pop %v1662
      %v1994 = vmul.f32 %v1993, 0.6931472
      %v1995 = vlog2.pop %v1667
      %v1996 = vmul.f32 %v1995, 0.6931472
      %v1997 = vlog2.pop %v1672
      %v1998 = vmul.f32 %v1997, 0.6931472
      %v1999 = vlog2.pop %v1677
      %v2000 = vmul.f32 %v1999, 0.6931472
      %v2001 = vlog2.pop %v1682
      %v2002 = vmul.f32 %v2001, 0.6931472
      %v2003 = vlog2.pop %v1687
      %v2004 = vmul.f32 %v2003, 0.6931472
      %v2005 = vlog2.pop %v1692
      %v2006 = vmul.f32 %v2005, 0.6931472
      %v2007 = vlog2.pop %v1697
      %v2008 = vmul.f32 %v2007, 0.6931472
      %v2009 = vlog2.pop %v1702
      %v2010 = vmul.f32 %v2009, 0.6931472
      %v2011 = vlog2.pop %v1707
      %v2012 = vmul.f32 %v2011, 0.6931472
      %v2013 = vlog2.pop %v1712
      %v2014 = vmul.f32 %v2013, 0.6931472
      %v2015 = vlog2.pop %v1717
      %v2016 = vmul.f32 %v2015, 0.6931472
      %v2017 = vlog2.pop %v1722
      %v2018 = vmul.f32 %v2017, 0.6931472
      %v2019 = vlog2.pop %v1727
      %v2020 = vmul.f32 %v2019, 0.6931472
      %v2021 = vsub.f32 %v1990, %v1913
      %v2022 = vsub.f32 %v1992, %v1918
      %v2023 = vsub.f32 %v1994, %v1923
      %v2024 = vsub.f32 %v1996, %v1928
      %v2025 = vsub.f32 %v1998, %v1933
      %v2026 = vsub.f32 %v2000, %v1938
      %v2027 = vsub.f32 %v2002, %v1943
      %v2028 = vsub.f32 %v2004, %v1948
      %v2029 = vsub.f32 %v2006, %v1953
      %v2030 = vsub.f32 %v2008, %v1958
      %v2031 = vsub.f32 %v2010, %v1963
      %v2032 = vsub.f32 %v2012, %v1968
      %v2033 = vsub.f32 %v2014, %v1973
      %v2034 = vsub.f32 %v2016, %v1978
      %v2035 = vsub.f32 %v2018, %v1983
      %v2036 = vsub.f32 %v2020, %v1988
      %vm2037 = vcmp.ge.f32.partialorder %v1913, 0.0
      %vm2038 = vcmp.ge.f32.partialorder %v1918, 0.0
      %vm2039 = vcmp.ge.f32.partialorder %v1923, 0.0
      %vm2040 = vcmp.ge.f32.partialorder %v1928, 0.0
      %vm2041 = vcmp.ge.f32.partialorder %v1933, 0.0
      %vm2042 = vcmp.ge.f32.partialorder %v1938, 0.0
      %vm2043 = vcmp.ge.f32.partialorder %v1943, 0.0
      %vm2044 = vcmp.ge.f32.partialorder %v1948, 0.0
      %vm2045 = vcmp.ge.f32.partialorder %v1953, 0.0
      %vm2046 = vcmp.ge.f32.partialorder %v1958, 0.0
      %vm2047 = vcmp.ge.f32.partialorder %v1963, 0.0
      %vm2048 = vcmp.ge.f32.partialorder %v1968, 0.0
      %vm2049 = vcmp.ge.f32.partialorder %v1973, 0.0
      %vm2050 = vcmp.ge.f32.partialorder %v1978, 0.0
      %vm2051 = vcmp.ge.f32.partialorder %v1983, 0.0
      %vm2052 = vcmp.ge.f32.partialorder %v1988, 0.0
      %v2053 = vsel %vm2037, 1, 0
      %v2054 = vsel %vm2038, 1, 0
      %v2055 = vsel %vm2039, 1, 0
      %v2056 = vsel %vm2040, 1, 0
      %v2057 = vsel %vm2041, 1, 0
      %v2058 = vsel %vm2042, 1, 0
      %v2059 = vsel %vm2043, 1, 0
      %v2060 = vsel %vm2044, 1, 0
      %v2061 = vsel %vm2045, 1, 0
      %v2062 = vsel %vm2046, 1, 0
      %v2063 = vsel %vm2047, 1, 0
      %v2064 = vsel %vm2048, 1, 0
      %v2065 = vsel %vm2049, 1, 0
      %v2066 = vsel %vm2050, 1, 0
      %v2067 = vsel %vm2051, 1, 0
      %v2068 = vsel %vm2052, 1, 0
      %v2069 = vcvt.s32.f32 %v2053
      %v2070 = vcvt.s32.f32 %v2054
      %v2071 = vcvt.s32.f32 %v2055
      %v2072 = vcvt.s32.f32 %v2056
      %v2073 = vcvt.s32.f32 %v2057
      %v2074 = vcvt.s32.f32 %v2058
      %v2075 = vcvt.s32.f32 %v2059
      %v2076 = vcvt.s32.f32 %v2060
      %v2077 = vcvt.s32.f32 %v2061
      %v2078 = vcvt.s32.f32 %v2062
      %v2079 = vcvt.s32.f32 %v2063
      %v2080 = vcvt.s32.f32 %v2064
      %v2081 = vcvt.s32.f32 %v2065
      %v2082 = vcvt.s32.f32 %v2066
      %v2083 = vcvt.s32.f32 %v2067
      %v2084 = vcvt.s32.f32 %v2068
      %vm2085 = vcmp.eq.s32.totalorder %v1729, 0
      %v2086 = vmul.f32 %v1360, %v2021
      %v2087 = vmul.f32 %v1361, %v2022
      %v2088 = vmul.f32 %v1362, %v2023
      %v2089 = vmul.f32 %v1363, %v2024
      %v2090 = vmul.f32 %v1364, %v2025
      %v2091 = vmul.f32 %v1365, %v2026
      %v2092 = vmul.f32 %v1366, %v2027
      %v2093 = vmul.f32 %v1367, %v2028
      %v2094 = vmul.f32 %v1368, %v2029
      %v2095 = vmul.f32 %v1369, %v2030
      %v2096 = vmul.f32 %v1370, %v2031
      %v2097 = vmul.f32 %v1371, %v2032
      %v2098 = vmul.f32 %v1372, %v2033
      %v2099 = vmul.f32 %v1373, %v2034
      %v2100 = vmul.f32 %v1374, %v2035
      %v2101 = vmul.f32 %v1375, %v2036
      %v2102 = vadd.f32 %v2086, 0.0
      %v2103 = vadd.f32 %v2087, 0.0
      %v2104 = vadd.f32 %v2088, 0.0
      %v2105 = vadd.f32 %v2089, 0.0
      %v2106 = vadd.f32 %v2090, 0.0
      %v2107 = vadd.f32 %v2091, 0.0
      %v2108 = vadd.f32 %v2092, 0.0
      %v2109 = vadd.f32 %v2093, 0.0
      %v2110 = vadd.f32 %v2094, 0.0
      %v2111 = vadd.f32 %v2095, 0.0
      %v2112 = vadd.f32 %v2096, 0.0
      %v2113 = vadd.f32 %v2097, 0.0
      %v2114 = vadd.f32 %v2098, 0.0
      %v2115 = vadd.f32 %v2099, 0.0
      %v2116 = vadd.f32 %v2100, 0.0
      %v2117 = vadd.f32 %v2101, 0.0
      %vm2118 = vcmask 7168
      %v2119 = vsel %vm2118, %v2102, 0.0
      %v2120 = vsel %vm2118, %v2103, 0.0
      %v2121 = vadd.f32 %v2119, %v2120
      %v2122 = vsel %vm2118, %v2104, 0.0
      %v2123 = vadd.f32 %v2121, %v2122
      %v2124 = vsel %vm2118, %v2105, 0.0
      %v2125 = vadd.f32 %v2123, %v2124
      %v2126 = vsel %vm2118, %v2106, 0.0
      %v2127 = vadd.f32 %v2125, %v2126
      %v2128 = vsel %vm2118, %v2107, 0.0
      %v2129 = vadd.f32 %v2127, %v2128
      %v2130 = vsel %vm2118, %v2108, 0.0
      %v2131 = vadd.f32 %v2129, %v2130
      %v2132 = vsel %vm2118, %v2109, 0.0
      %v2133 = vadd.f32 %v2131, %v2132
      %v2134 = vsel %vm2118, %v2110, 0.0
      %v2135 = vadd.f32 %v2133, %v2134
      %v2136 = vsel %vm2118, %v2111, 0.0
      %v2137 = vadd.f32 %v2135, %v2136
      %v2138 = vsel %vm2118, %v2112, 0.0
      %v2139 = vadd.f32 %v2137, %v2138
      %v2140 = vsel %vm2118, %v2113, 0.0
      %v2141 = vadd.f32 %v2139, %v2140
      %v2142 = vsel %vm2118, %v2114, 0.0
      %v2143 = vadd.f32 %v2141, %v2142
      %v2144 = vsel %vm2118, %v2115, 0.0
      %v2145 = vadd.f32 %v2143, %v2144
      %v2146 = vsel %vm2118, %v2116, 0.0
      %v2147 = vadd.f32 %v2145, %v2146
      %v2148 = vsel %vm2118, %v2117, 0.0
      %v2149 = vadd.f32 %v2147, %v2148
      %v2150 = vrot.slane %v2149, 4
      %v2151 = vadd.f32 %v2149, %v2150
      %v2152 = vrot.slane %v2151, 2
      %v2153 = vadd.f32 %v2151, %v2152
      %v2154 = vrot.slane %v2153, 1
      %v2155 = vadd.f32 %v2153, %v2154
      %2157 = vset.pattern.permute.xlu0 0
      %2158 = vperm.xlu0 %2157, %v2155
      %v2159 = vpop.permute.xlu0 %2158
      %v2161 = vsel %vm2085, %v2159, 0.0
      %vm2162 = vcmp.eq.s32.totalorder %v1729, 1
      %v2163 = vmul.f32 %v1360, %v2069
      %v2164 = vmul.f32 %v1361, %v2070
      %v2165 = vmul.f32 %v1362, %v2071
      %v2166 = vmul.f32 %v1363, %v2072
      %v2167 = vmul.f32 %v1364, %v2073
      %v2168 = vmul.f32 %v1365, %v2074
      %v2169 = vmul.f32 %v1366, %v2075
      %v2170 = vmul.f32 %v1367, %v2076
      %v2171 = vmul.f32 %v1368, %v2077
      %v2172 = vmul.f32 %v1369, %v2078
      %v2173 = vmul.f32 %v1370, %v2079
      %v2174 = vmul.f32 %v1371, %v2080
      %v2175 = vmul.f32 %v1372, %v2081
      %v2176 = vmul.f32 %v1373, %v2082
      %v2177 = vmul.f32 %v1374, %v2083
      %v2178 = vmul.f32 %v1375, %v2084
      %v2179 = vadd.f32 %v2163, 0.0
      %v2180 = vadd.f32 %v2164, 0.0
      %v2181 = vadd.f32 %v2165, 0.0
      %v2182 = vadd.f32 %v2166, 0.0
      %v2183 = vadd.f32 %v2167, 0.0
      %v2184 = vadd.f32 %v2168, 0.0
      %v2185 = vadd.f32 %v2169, 0.0
      %v2186 = vadd.f32 %v2170, 0.0
      %v2187 = vadd.f32 %v2171, 0.0
      %v2188 = vadd.f32 %v2172, 0.0
      %v2189 = vadd.f32 %v2173, 0.0
      %v2190 = vadd.f32 %v2174, 0.0
      %v2191 = vadd.f32 %v2175, 0.0
      %v2192 = vadd.f32 %v2176, 0.0
      %v2193 = vadd.f32 %v2177, 0.0
      %v2194 = vadd.f32 %v2178, 0.0
      %v2195 = vsel %vm2118, %v2179, 0.0
      %v2196 = vsel %vm2118, %v2180, 0.0
      %v2197 = vadd.f32 %v2195, %v2196
      %v2198 = vsel %vm2118, %v2181, 0.0
      %v2199 = vadd.f32 %v2197, %v2198
      %v2200 = vsel %vm2118, %v2182, 0.0
      %v2201 = vadd.f32 %v2199, %v2200
      %v2202 = vsel %vm2118, %v2183, 0.0
      %v2203 = vadd.f32 %v2201, %v2202
      %v2204 = vsel %vm2118, %v2184, 0.0
      %v2205 = vadd.f32 %v2203, %v2204
      %v2206 = vsel %vm2118, %v2185, 0.0
      %v2207 = vadd.f32 %v2205, %v2206
      %v2208 = vsel %vm2118, %v2186, 0.0
      %v2209 = vadd.f32 %v2207, %v2208
      %v2210 = vsel %vm2118, %v2187, 0.0
      %v2211 = vadd.f32 %v2209, %v2210
      %v2212 = vsel %vm2118, %v2188, 0.0
      %v2213 = vadd.f32 %v2211, %v2212
      %v2214 = vsel %vm2118, %v2189, 0.0
      %v2215 = vadd.f32 %v2213, %v2214
      %v2216 = vsel %vm2118, %v2190, 0.0
      %v2217 = vadd.f32 %v2215, %v2216
      %v2218 = vsel %vm2118, %v2191, 0.0
      %v2219 = vadd.f32 %v2217, %v2218
      %v2220 = vsel %vm2118, %v2192, 0.0
      %v2221 = vadd.f32 %v2219, %v2220
      %v2222 = vsel %vm2118, %v2193, 0.0
      %v2223 = vadd.f32 %v2221, %v2222
      %v2224 = vsel %vm2118, %v2194, 0.0
      %v2225 = vadd.f32 %v2223, %v2224
      %v2226 = vrot.slane %v2225, 4
      %v2227 = vadd.f32 %v2225, %v2226
      %v2228 = vrot.slane %v2227, 2
      %v2229 = vadd.f32 %v2227, %v2228
      %v2230 = vrot.slane %v2229, 1
      %v2231 = vadd.f32 %v2229, %v2230
      %2233 = vset.pattern.permute.xlu0 0
      %2234 = vperm.xlu0 %2233, %v2231
      %v2235 = vpop.permute.xlu0 %2234
      %v2237 = vsel %vm2162, %v2235, 0.0
      %v2238 = vadd.f32 %v2161, %v2237
      %vm2239 = vcmp.eq.s32.totalorder %v1729, 2
      %v2240 = vadd.f32 %v1360, 0.0
      %v2241 = vadd.f32 %v1361, 0.0
      %v2242 = vadd.f32 %v1362, 0.0
      %v2243 = vadd.f32 %v1363, 0.0
      %v2244 = vadd.f32 %v1364, 0.0
      %v2245 = vadd.f32 %v1365, 0.0
      %v2246 = vadd.f32 %v1366, 0.0
      %v2247 = vadd.f32 %v1367, 0.0
      %v2248 = vadd.f32 %v1368, 0.0
      %v2249 = vadd.f32 %v1369, 0.0
      %v2250 = vadd.f32 %v1370, 0.0
      %v2251 = vadd.f32 %v1371, 0.0
      %v2252 = vadd.f32 %v1372, 0.0
      %v2253 = vadd.f32 %v1373, 0.0
      %v2254 = vadd.f32 %v1374, 0.0
      %v2255 = vadd.f32 %v1375, 0.0
      %v2256 = vsel %vm2118, %v2240, 0.0
      %v2257 = vsel %vm2118, %v2241, 0.0
      %v2258 = vadd.f32 %v2256, %v2257
      %v2259 = vsel %vm2118, %v2242, 0.0
      %v2260 = vadd.f32 %v2258, %v2259
      %v2261 = vsel %vm2118, %v2243, 0.0
      %v2262 = vadd.f32 %v2260, %v2261
      %v2263 = vsel %vm2118, %v2244, 0.0
      %v2264 = vadd.f32 %v2262, %v2263
      %v2265 = vsel %vm2118, %v2245, 0.0
      %v2266 = vadd.f32 %v2264, %v2265
      %v2267 = vsel %vm2118, %v2246, 0.0
      %v2268 = vadd.f32 %v2266, %v2267
      %v2269 = vsel %vm2118, %v2247, 0.0
      %v2270 = vadd.f32 %v2268, %v2269
      %v2271 = vsel %vm2118, %v2248, 0.0
      %v2272 = vadd.f32 %v2270, %v2271
      %v2273 = vsel %vm2118, %v2249, 0.0
      %v2274 = vadd.f32 %v2272, %v2273
      %v2275 = vsel %vm2118, %v2250, 0.0
      %v2276 = vadd.f32 %v2274, %v2275
      %v2277 = vsel %vm2118, %v2251, 0.0
      %v2278 = vadd.f32 %v2276, %v2277
      %v2279 = vsel %vm2118, %v2252, 0.0
      %v2280 = vadd.f32 %v2278, %v2279
      %v2281 = vsel %vm2118, %v2253, 0.0
      %v2282 = vadd.f32 %v2280, %v2281
      %v2283 = vsel %vm2118, %v2254, 0.0
      %v2284 = vadd.f32 %v2282, %v2283
      %v2285 = vsel %vm2118, %v2255, 0.0
      %v2286 = vadd.f32 %v2284, %v2285
      %v2287 = vrot.slane %v2286, 4
      %v2288 = vadd.f32 %v2286, %v2287
      %v2289 = vrot.slane %v2288, 2
      %v2290 = vadd.f32 %v2288, %v2289
      %v2291 = vrot.slane %v2290, 1
      %v2292 = vadd.f32 %v2290, %v2291
      %2294 = vset.pattern.permute.xlu0 0
      %2295 = vperm.xlu0 %2294, %v2292
      %v2296 = vpop.permute.xlu0 %2295
      %v2298 = vsel %vm2239, %v2296, 0.0
      %v2299 = vadd.f32 %v2238, %v2298
      %2300 = vst [vmem:[%s271] sm:$0x1] %v2299
      %p2301 = scmp.lt.s32.totalorder %s17, 1
      %s2302 = scalar_select %p2301, %s17, 1
      %s2303 = scalar_lea.vmem %s6, %s2302
      // Predicated region
      $region45: #{bert_pretraining_heads_forward.1} parent=43 // pred_check
        %p2304 = pneg %p171
      $region46: #{bert_pretraining_heads_forward.1} parent=43 // pred_check_branch
        %2306 = sbr.rel (%p2304) target = $region48
      $region47: #{bert_pretraining_heads_forward.1} parent=43 // pred_region
        _
      $region48: #{bert_pretraining_heads_forward.1} parent=43 // pred_fallthru
        _
    $region44: #{bert_pretraining_heads_forward.1} parent=5 // pred_fallthru
      _
    %p2307 = scmp.le.s32.totalorder 2, %s12
    // Predicated region
    $region49: #{bert_pretraining_heads_forward.1} parent=5 // pred_check
      %p2308 = pneg %p2307
    $region50: #{bert_pretraining_heads_forward.1} parent=5 // pred_check_branch
      %2310 = sbr.rel (%p2308) target = $region52
    $region51: #{bert_pretraining_heads_forward.1} parent=5 // pred_region
      %s2311 = ssub.s32 %s12, 2
      // Predicated region
      $region53: #{bert_pretraining_heads_forward.1} parent=51 // pred_check
        %p2312 = pneg %p177
      $region54: #{bert_pretraining_heads_forward.1} parent=51 // pred_check_branch
        %2314 = sbr.rel (%p2312) target = $region56
      $region55: #{bert_pretraining_heads_forward.1} parent=51 // pred_region
        %p2315 = scmp.lt.s32.totalorder %s18, 1
        %s2316 = scalar_select %p2315, %s18, 1
        %s2317 = scalar_lea.vmem %s6, %s2316
      $region56: #{bert_pretraining_heads_forward.1} parent=51 // pred_fallthru
        _
    $region52: #{bert_pretraining_heads_forward.1} parent=5 // pred_fallthru
      _
  $region6: #{bert_pretraining_heads_forward.1} parent=0 // loop_footer
    %s16 = sadd.s32 1, %s12
  $region7: #{bert_pretraining_heads_forward.1} parent=0 // loop_footer_branch
    %11 = sbr.rel target = $region3
  $region8: #{bert_pretraining_heads_forward.1} parent=0 // loop_exit
    _

</llo_original>
